<compile_context>
chip_gen: v7x
topology: tpu7x:2x2x1
jax: 0.10.0
libtpu: 0.0.40
codegen_flags: <defaults>
</compile_context>

<pallas_src>
import functools

import jax
import jax.numpy as jnp
from jax.experimental import pallas as pl
from jax.experimental.pallas import tpu as pltpu


def _round_up(x: int, m: int) -> int:
    return ((x + m - 1) // m) * m


# ----------------------------------------------------------------------------
# Fused decoder-step kernel: gen_vocab_dist (tiled over V) + multi-layer LSTM
# ----------------------------------------------------------------------------
def _make_decoder_step_kernel(hidden_size: int, num_layers: int):
    H = hidden_size
    L = num_layers

    def kernel(*refs):
        (dec_state_ref, x_ref, h_in_ref, c_in_ref,
         gv_w1_ref, gv_b1_ref, gv_w2_ref, gv_b2_ref) = refs[:8]
        layer_refs = refs[8:8 + 3 * L]                  # (w_ih_0, w_hh_0, b_0, ...)
        logits_ref, h_out_ref, c_out_ref, hh_ref = refs[8 + 3 * L:]

        j = pl.program_id(0)

        # ---- once per decode step (first vocab tile): ReLU hidden + LSTM --------
        @pl.when(j == 0)
        def _():
            # gen_vocab_dist stage 1: Linear(H,H) + ReLU, cached in VMEM scratch and
            # reused by every vocab tile below.
            hh = jnp.dot(dec_state_ref[...], gv_w1_ref[...],
                         preferred_element_type=jnp.float32) + gv_b1_ref[...]
            hh_ref[...] = jnp.maximum(hh, 0.0)

            # Multi-layer LSTM, single time step. bf16 weights, f32 accumulate,
            # f32 pointwise math. Inter-layer h/c never leave VMEM.
            x = x_ref[...]                               # (B, input_size), f32
            for l in range(L):
                w_ih = layer_refs[3 * l]                 # (in_dim_l, 4H) bf16
                w_hh = layer_refs[3 * l + 1]             # (H, 4H)        bf16
                bias = layer_refs[3 * l + 2][...]        # (1, 4H) = b_ih + b_hh, f32
                h_prev = h_in_ref[l]                     # (B, H) f32
                c_prev = c_in_ref[l]                     # (B, H) f32

                # Two MXU dots instead of a lane-axis concat + one dot.
                gates = (jnp.dot(x.astype(w_ih.dtype), w_ih[...],
                                 preferred_element_type=jnp.float32)
                         + jnp.dot(h_prev.astype(w_hh.dtype), w_hh[...],
                                   preferred_element_type=jnp.float32)
                         + bias)                         # (B, 4H), order [i, f, g, o]

                # One full-width sigmoid pass + tanh only on the g slice (~5H lanes).
                sig = jax.nn.sigmoid(gates)
                g_g = jnp.tanh(gates[:, 2 * H:3 * H])
                i_g = sig[:, 0 * H:1 * H]
                f_g = sig[:, 1 * H:2 * H]
                o_g = sig[:, 3 * H:4 * H]

                c_new = f_g * c_prev + i_g * g_g
                h_new = o_g * jnp.tanh(c_new)

                h_out_ref[l] = h_new                     # (L, B, H) output, row l
                c_out_ref[l] = c_new
                x = h_new                                # feeds next layer (in VMEM)

        # ---- every grid step: one streamed vocab tile of class_logits -----------
        hh_b = hh_ref[...].astype(gv_w2_ref.dtype)       # (B, H) bf16
        logits_ref[...] = (jnp.dot(hh_b, gv_w2_ref[...],
                                   preferred_element_type=jnp.float32)
                           + gv_b2_ref[...])

    return kernel


# ----------------------------------------------------------------------------
# One-time parameter preparation (pad + cast); NOT part of the per-step path
# ----------------------------------------------------------------------------
def prepare_decoder_params(params, *, tile_v: int = 128):
    """Pad the vocab projection once to a TILE_V-multiple and cast the streamed
    weights (gv_w2, LSTM W_ih/W_hh) to bf16. Returns an arrays-only dict."""
    V = params["gv_w2"].shape[1]
    V_pad = _round_up(V, tile_v)
    gv_w2 = params["gv_w2"]
    gv_b2 = params["gv_b2"]
    if V_pad != V:
        gv_w2 = jnp.pad(gv_w2, ((0, 0), (0, V_pad - V)))
        gv_b2 = jnp.pad(gv_b2, ((0, 0), (0, V_pad - V)))
    return {
        "gv_w1": params["gv_w1"].astype(jnp.float32),
        "gv_b1": params["gv_b1"].astype(jnp.float32),
        "gv_w2_pad": gv_w2.astype(jnp.bfloat16),
        "gv_b2_pad": gv_b2.astype(jnp.float32),
        "lstm_wih_t": [w.astype(jnp.bfloat16) for w in params["lstm_wih_t"]],
        "lstm_whh_t": [w.astype(jnp.bfloat16) for w in params["lstm_whh_t"]],
        "lstm_b": [b.astype(jnp.float32) for b in params["lstm_b"]],
    }


# ----------------------------------------------------------------------------
# Decoder (no-attention path) forward — one fused pallas_call, vocab grid
# ----------------------------------------------------------------------------
def decoder_forward(input_emb, state, prep, *, hidden_size, num_layers,
                    vocab_size, tile_v):
    """Mirrors Decoder.forward with is_attention=False."""
    if input_emb.ndim == 2:
        input_emb = input_emb[:, None, :]               # unsqueeze(1)
    B = input_emb.shape[0]
    H = hidden_size
    L = num_layers
    V = vocab_size
    TILE_V = tile_v

    gv_w2 = prep["gv_w2_pad"]                           # (H, V_pad) bf16
    gv_b2 = prep["gv_b2_pad"]                           # (1, V_pad) f32
    V_pad = gv_w2.shape[1]
    n_vt = V_pad // TILE_V

    hidden = state["hidden"].reshape(L, B, H)           # .view(-1, B, H)
    context = state["context"].reshape(L, B, H)
    dec_state = state["dec_state"].reshape(B, H)        # (B, 1, H) -> (B, H)
    x0 = input_emb[:, 0, :]                             # (B, input_size), seq_len == 1
    in_size = x0.shape[1]

    inputs = [dec_state, x0, hidden, context,
              prep["gv_w1"], prep["gv_b1"], gv_w2, gv_b2]
    in_specs = [
        pl.BlockSpec((B, H), lambda j: (0, 0)),
        pl.BlockSpec((B, in_size), lambda j: (0, 0)),
        pl.BlockSpec((L, B, H), lambda j: (0, 0, 0)),
        pl.BlockSpec((L, B, H), lambda j: (0, 0, 0)),
        pl.BlockSpec((H, H), lambda j: (0, 0)),
        pl.BlockSpec((1, H), lambda j: (0, 0)),
        pl.BlockSpec((H, TILE_V), lambda j: (0, j)),     # streamed / double-buffered
        pl.BlockSpec((1, TILE_V), lambda j: (0, j)),
    ]
    for l in range(L):
        w_ih = prep["lstm_wih_t"][l]                    # (in_dim_l, 4H) bf16
        w_hh = prep["lstm_whh_t"][l]                    # (H, 4H) bf16
        b = prep["lstm_b"][l]                           # (1, 4H) f32
        inputs += [w_ih, w_hh, b]
        in_specs += [
            pl.BlockSpec(w_ih.shape, lambda j: (0, 0)),
            pl.BlockSpec(w_hh.shape, lambda j: (0, 0)),
            pl.BlockSpec(b.shape, lambda j: (0, 0)),
        ]

    out_shape = (jax.ShapeDtypeStruct((B, V_pad), jnp.float32),
                 jax.ShapeDtypeStruct((L, B, H), jnp.float32),
                 jax.ShapeDtypeStruct((L, B, H), jnp.float32))
    out_specs = (pl.BlockSpec((B, TILE_V), lambda j: (0, j)),   # lane-dense logits tile
                 pl.BlockSpec((L, B, H), lambda j: (0, 0, 0)),
                 pl.BlockSpec((L, B, H), lambda j: (0, 0, 0)))

    kernel = _make_decoder_step_kernel(H, L)
    logits_pad, h_new, c_new = pl.pallas_call(
        kernel,
        out_shape=out_shape,
        grid_spec=pltpu.PrefetchScalarGridSpec(
            num_scalar_prefetch=0,
            grid=(n_vt,),
            in_specs=in_specs,
            out_specs=out_specs,
            scratch_shapes=[pltpu.VMEM((B, H), jnp.float32)],   # cached ReLU hidden
        ),
        compiler_params=pltpu.CompilerParams(
            # h/c outputs + hh scratch are reused across the vocab axis -> arbitrary.
            dimension_semantics=("arbitrary",),
            vmem_limit_bytes=32 * 1024 * 1024,
        ),
    )(*inputs)

    out = dict(state)
    out["class_logits"] = logits_pad[:, :V]              # (B, V)
    out["dec_state"] = h_new[L - 1][:, None, :]          # (B, 1, H), last layer output
    out["coverage"] = state["coverage"]
    out["attention"] = None
    out["hidden"] = h_new.reshape(B, -1, H)              # .view(B, -1, H) (raw reshape)
    out["context"] = c_new.reshape(B, -1, H)
    return out


# ----------------------------------------------------------------------------
# Pure-JAX reference (mirrors the kernel's bf16 weight rounding exactly)
# ----------------------------------------------------------------------------
def _reference_forward(input_emb, state, prep, *, hidden_size, num_layers, vocab_size):
    if input_emb.ndim == 2:
        input_emb = input_emb[:, None, :]
    B, H, V = input_emb.shape[0], hidden_size, vocab_size
    hidden = state["hidden"].reshape(-1, B, H)
    context = state["context"].reshape(-1, B, H)
    dec_state = state["dec_state"].reshape(B, H)

    def rt(a):  # bf16 round trip (mirrors in-kernel activation casts)
        return a.astype(jnp.bfloat16).astype(jnp.float32)

    hh = jnp.maximum(dec_state @ prep["gv_w1"] + prep["gv_b1"], 0.0)
    w2 = prep["gv_w2_pad"].astype(jnp.float32)[:, :V]
    logits = rt(hh) @ w2 + prep["gv_b2_pad"][:, :V]

    x = input_emb[:, 0, :]
    hs, cs = [], []
    for l in range(num_layers):
        w_ih = prep["lstm_wih_t"][l].astype(jnp.float32)
        w_hh = prep["lstm_whh_t"][l].astype(jnp.float32)
        g = rt(x) @ w_ih + rt(hidden[l]) @ w_hh + prep["lstm_b"][l]
        i, f, gg, o = jnp.split(g, 4, axis=-1)
        c_new = jax.nn.sigmoid(f) * context[l] + jax.nn.sigmoid(i) * jnp.tanh(gg)
        h_new = jax.nn.sigmoid(o) * jnp.tanh(c_new)
        hs.append(h_new)
        cs.append(c_new)
        x = h_new
    return (logits, x[:, None, :],
            jnp.stack(hs, 0).reshape(B, -1, H),
            jnp.stack(cs, 0).reshape(B, -1, H))


# ----------------------------------------------------------------------------
# Main
# ----------------------------------------------------------------------------
if __name__ == "__main__":
    # Small synthetic config consistent with the module (vocab > TILE_V so the
    # vocab grid actually iterates).
    batch_size = 2
    input_size = 16
    hidden_size = 32
    num_layers = 2
    vocab_size = 300
    src_len = 8
    TILE_V = 128

    key = jax.random.PRNGKey(0)
    ks = jax.random.split(key, 16)
    scale = 1.0 / jnp.sqrt(hidden_size)

    # Deterministic parameter init (shapes follow torch.nn.LSTM / Linear).
    lstm_wih_t, lstm_whh_t, lstm_b = [], [], []
    for layer in range(num_layers):
        in_dim = input_size if layer == 0 else hidden_size
        k0, k1, k2, k3 = jax.random.split(ks[layer], 4)
        w_ih = jax.random.uniform(k0, (4 * hidden_size, in_dim), jnp.float32, -scale, scale)
        w_hh = jax.random.uniform(k1, (4 * hidden_size, hidden_size), jnp.float32, -scale, scale)
        b_ih = jax.random.uniform(k2, (4 * hidden_size,), jnp.float32, -scale, scale)
        b_hh = jax.random.uniform(k3, (4 * hidden_size,), jnp.float32, -scale, scale)
        lstm_wih_t.append(w_ih.T)                        # (in_dim, 4H)
        lstm_whh_t.append(w_hh.T)                        # (H, 4H)
        lstm_b.append((b_ih + b_hh)[None, :])            # (1, 4H), pre-broadcast

    params = {
        "lstm_wih_t": lstm_wih_t,
        "lstm_whh_t": lstm_whh_t,
        "lstm_b": lstm_b,
        "gv_w1": jax.random.uniform(ks[8], (hidden_size, hidden_size), jnp.float32, -scale, scale),
        "gv_b1": jax.random.uniform(ks[9], (1, hidden_size), jnp.float32, -scale, scale),
        "gv_w2": jax.random.uniform(ks[10], (hidden_size, vocab_size), jnp.float32, -scale, scale),
        "gv_b2": jax.random.uniform(ks[11], (1, vocab_size), jnp.float32, -scale, scale),
    }

    # One-time prep: pad vocab projection, cast streamed weights to bf16.
    prep = prepare_decoder_params(params, tile_v=TILE_V)

    # Inputs / decoder state.
    input_emb = jax.random.normal(ks[12], (batch_size, 1, input_size), jnp.float32)
    state = {
        "source_ids": jax.random.randint(ks[13], (batch_size, src_len), 0, vocab_size),
        "max_oov": jnp.zeros((batch_size,), jnp.int32),
        "encoder_states": jax.random.normal(ks[14], (batch_size, src_len, hidden_size), jnp.float32),
        "hidden": jax.random.normal(ks[15], (batch_size, num_layers, hidden_size), jnp.float32),
        "context": jax.random.normal(ks[7], (batch_size, num_layers, hidden_size), jnp.float32),
        "dec_state": jax.random.normal(ks[6], (batch_size, 1, hidden_size), jnp.float32),
        "source_mask": jnp.ones((batch_size, src_len), jnp.float32),
        "coverage": jnp.zeros((batch_size, src_len), jnp.float32),
    }

    step_fn = jax.jit(functools.partial(
        decoder_forward, hidden_size=hidden_size, num_layers=num_layers,
        vocab_size=vocab_size, tile_v=TILE_V))

    out_state = step_fn(input_emb, state, prep)
    jax.block_until_ready(out_state["class_logits"])
    jax.block_until_ready(out_state["dec_state"])
    jax.block_until_ready(out_state["hidden"])
    jax.block_until_ready(out_state["context"])

    # Sanity-check against a pure-JAX reference with identical bf16 rounding.
    ref_logits, ref_dec, ref_h, ref_c = _reference_forward(
        input_emb, state, prep, hidden_size=hidden_size, num_layers=num_layers,
        vocab_size=vocab_size)
    assert jnp.allclose(out_state["class_logits"], ref_logits, atol=5e-4), "class_logits mismatch"
    assert jnp.allclose(out_state["dec_state"], ref_dec, atol=5e-4), "dec_state mismatch"
    assert jnp.allclose(out_state["hidden"], ref_h, atol=5e-4), "hidden mismatch"
    assert jnp.allclose(out_state["context"], ref_c, atol=5e-4), "context mismatch"

    print("KERNEL_OK")
</pallas_src>

<mosaic_0001>
module attributes {stable_mosaic.version = 11 : i64} {
  func.func @kernel(%arg0: i32, %arg1: memref<2x32xf32, #tpu.memory_space<vmem>>, %arg2: memref<2x16xf32, #tpu.memory_space<vmem>>, %arg3: memref<2x2x32xf32, #tpu.memory_space<vmem>>, %arg4: memref<2x2x32xf32, #tpu.memory_space<vmem>>, %arg5: memref<32x32xf32, #tpu.memory_space<vmem>>, %arg6: memref<1x32xf32, #tpu.memory_space<vmem>>, %arg7: memref<32x128xbf16, #tpu.memory_space<vmem>>, %arg8: memref<1x128xf32, #tpu.memory_space<vmem>>, %arg9: memref<16x128xbf16, #tpu.memory_space<vmem>>, %arg10: memref<32x128xbf16, #tpu.memory_space<vmem>>, %arg11: memref<1x128xf32, #tpu.memory_space<vmem>>, %arg12: memref<32x128xbf16, #tpu.memory_space<vmem>>, %arg13: memref<32x128xbf16, #tpu.memory_space<vmem>>, %arg14: memref<1x128xf32, #tpu.memory_space<vmem>>, %arg15: memref<2x128xf32, #tpu.memory_space<vmem>>, %arg16: memref<2x2x32xf32, #tpu.memory_space<vmem>>, %arg17: memref<2x2x32xf32, #tpu.memory_space<vmem>>, %arg18: memref<2x32xf32, #tpu.memory_space<vmem>>) attributes {dimension_semantics = [#tpu.dimension_semantics<arbitrary>], iteration_bounds = array<i64: 3>, scalar_prefetch = 0 : i64, scratch_operands = 1 : i64, tpu.core_type = #tpu.core_type<tc>, window_params = [{pipeline_mode = #tpu.pipeline_mode<synchronous>, transform_indices = @transform_0, window_bounds = array<i64: 2, 32>}, {pipeline_mode = #tpu.pipeline_mode<synchronous>, transform_indices = @transform_1, window_bounds = array<i64: 2, 16>}, {pipeline_mode = #tpu.pipeline_mode<synchronous>, transform_indices = @transform_2, window_bounds = array<i64: 2, 2, 32>}, {pipeline_mode = #tpu.pipeline_mode<synchronous>, transform_indices = @transform_3, window_bounds = array<i64: 2, 2, 32>}, {pipeline_mode = #tpu.pipeline_mode<synchronous>, transform_indices = @transform_4, window_bounds = array<i64: 32, 32>}, {pipeline_mode = #tpu.pipeline_mode<synchronous>, transform_indices = @transform_5, window_bounds = array<i64: 1, 32>}, {transform_indices = @transform_6, window_bounds = array<i64: 32, 128>}, {transform_indices = @transform_7, window_bounds = array<i64: 1, 128>}, {pipeline_mode = #tpu.pipeline_mode<synchronous>, transform_indices = @transform_8, window_bounds = array<i64: 16, 128>}, {pipeline_mode = #tpu.pipeline_mode<synchronous>, transform_indices = @transform_9, window_bounds = array<i64: 32, 128>}, {pipeline_mode = #tpu.pipeline_mode<synchronous>, transform_indices = @transform_10, window_bounds = array<i64: 1, 128>}, {pipeline_mode = #tpu.pipeline_mode<synchronous>, transform_indices = @transform_11, window_bounds = array<i64: 32, 128>}, {pipeline_mode = #tpu.pipeline_mode<synchronous>, transform_indices = @transform_12, window_bounds = array<i64: 32, 128>}, {pipeline_mode = #tpu.pipeline_mode<synchronous>, transform_indices = @transform_13, window_bounds = array<i64: 1, 128>}, {transform_indices = @transform_14, window_bounds = array<i64: 2, 128>}, {pipeline_mode = #tpu.pipeline_mode<synchronous>, transform_indices = @transform_15, window_bounds = array<i64: 2, 2, 32>}, {pipeline_mode = #tpu.pipeline_mode<synchronous>, transform_indices = @transform_16, window_bounds = array<i64: 2, 2, 32>}]} {
    %c0_i32 = arith.constant 0 : i32
    %0 = arith.cmpi eq, %arg0, %c0_i32 : i32
    %1 = arith.extui %0 : i1 to i32
    %c0_i32_0 = arith.constant 0 : i32
    %2 = arith.cmpi ne, %1, %c0_i32_0 : i32
    scf.if %2 {
      %c0_8 = arith.constant 0 : index
      %c0_9 = arith.constant 0 : index
      %11 = vector.load %arg1[%c0_8, %c0_9] : memref<2x32xf32, #tpu.memory_space<vmem>>, vector<2x32xf32>
      %c0_10 = arith.constant 0 : index
      %c0_11 = arith.constant 0 : index
      %12 = vector.load %arg5[%c0_10, %c0_11] : memref<32x32xf32, #tpu.memory_space<vmem>>, vector<32x32xf32>
      %cst_12 = arith.constant dense<0.000000e+00> : vector<2x32xf32>
      %13 = tpu.matmul %11, %12, %cst_12 {dimension_numbers = #tpu.dot_dimension_numbers<[1], [0], [0], [1], [0, 0, 1, 1], [], []>} : vector<2x32xf32>, vector<32x32xf32>, vector<2x32xf32> -> vector<2x32xf32>
      %c0_13 = arith.constant 0 : index
      %c0_14 = arith.constant 0 : index
      %14 = vector.load %arg6[%c0_13, %c0_14] : memref<1x32xf32, #tpu.memory_space<vmem>>, vector<1x32xf32>
      %15 = vector.broadcast %14 : vector<1x32xf32> to vector<2x32xf32>
      %16 = arith.addf %13, %15 : vector<2x32xf32>
      %cst_15 = arith.constant 0.000000e+00 : f32
      %17 = vector.broadcast %cst_15 : f32 to vector<2x32xf32>
      %18 = arith.maximumf %16, %17 : vector<2x32xf32>
      %c0_16 = arith.constant 0 : index
      %c0_17 = arith.constant 0 : index
      %19 = vector.load %arg18[%c0_16, %c0_17] : memref<2x32xf32, #tpu.memory_space<vmem>>, vector<2x32xf32>
      tpu.vector_store %arg18[%c0_16, %c0_17], %18 {strides = array<i32>} : memref<2x32xf32, #tpu.memory_space<vmem>>, vector<2x32xf32>,
      %c0_18 = arith.constant 0 : index
      %c0_19 = arith.constant 0 : index
      %20 = vector.load %arg2[%c0_18, %c0_19] : memref<2x16xf32, #tpu.memory_space<vmem>>, vector<2x16xf32>
      %c0_20 = arith.constant 0 : index
      %c0_21 = arith.constant 0 : index
      %21 = vector.load %arg11[%c0_20, %c0_21] : memref<1x128xf32, #tpu.memory_space<vmem>>, vector<1x128xf32>
      %c0_22 = arith.constant 0 : index
      %c0_23 = arith.constant 0 : index
      %c0_24 = arith.constant 0 : index
      %22 = vector.load %arg3[%c0_22, %c0_23, %c0_24] : memref<2x2x32xf32, #tpu.memory_space<vmem>>, vector<1x2x32xf32>
      %23 = vector.shape_cast %22 : vector<1x2x32xf32> to vector<2x32xf32>
      %c0_25 = arith.constant 0 : index
      %c0_26 = arith.constant 0 : index
      %c0_27 = arith.constant 0 : index
      %24 = vector.load %arg4[%c0_25, %c0_26, %c0_27] : memref<2x2x32xf32, #tpu.memory_space<vmem>>, vector<1x2x32xf32>
      %25 = vector.shape_cast %24 : vector<1x2x32xf32> to vector<2x32xf32>
      %26 = arith.truncf %20 : vector<2x16xf32> to vector<2x16xbf16>
      %c0_28 = arith.constant 0 : index
      %c0_29 = arith.constant 0 : index
      %27 = vector.load %arg9[%c0_28, %c0_29] : memref<16x128xbf16, #tpu.memory_space<vmem>>, vector<16x128xbf16>
      %cst_30 = arith.constant dense<0.000000e+00> : vector<2x128xf32>
      %28 = tpu.matmul %26, %27, %cst_30 {dimension_numbers = #tpu.dot_dimension_numbers<[1], [0], [0], [1], [0, 0, 1, 1], [], []>} : vector<2x16xbf16>, vector<16x128xbf16>, vector<2x128xf32> -> vector<2x128xf32>
      %29 = arith.truncf %23 : vector<2x32xf32> to vector<2x32xbf16>
      %c0_31 = arith.constant 0 : index
      %c0_32 = arith.constant 0 : index
      %30 = vector.load %arg10[%c0_31, %c0_32] : memref<32x128xbf16, #tpu.memory_space<vmem>>, vector<32x128xbf16>
      %cst_33 = arith.constant dense<0.000000e+00> : vector<2x128xf32>
      %31 = tpu.matmul %29, %30, %cst_33 {dimension_numbers = #tpu.dot_dimension_numbers<[1], [0], [0], [1], [0, 0, 1, 1], [], []>} : vector<2x32xbf16>, vector<32x128xbf16>, vector<2x128xf32> -> vector<2x128xf32>
      %32 = arith.addf %28, %31 : vector<2x128xf32>
      %33 = vector.broadcast %21 : vector<1x128xf32> to vector<2x128xf32>
      %34 = arith.addf %32, %33 : vector<2x128xf32>
      %35 = arith.negf %34 : vector<2x128xf32>
      %36 = math.exp %35 : vector<2x128xf32>
      %cst_34 = arith.constant 1.000000e+00 : f32
      %37 = vector.broadcast %cst_34 : f32 to vector<2x128xf32>
      %38 = arith.addf %37, %36 : vector<2x128xf32>
      %39 = arith.divf %37, %38 : vector<2x128xf32>
      %40 = vector.extract_strided_slice %34 {offsets = [0, 64], sizes = [2, 32], strides = [1, 1]} : vector<2x128xf32> to vector<2x32xf32>
      %41 = math.tanh %40 : vector<2x32xf32>
      %42 = vector.extract_strided_slice %39 {offsets = [0, 0], sizes = [2, 32], strides = [1, 1]} : vector<2x128xf32> to vector<2x32xf32>
      %43 = vector.extract_strided_slice %39 {offsets = [0, 32], sizes = [2, 32], strides = [1, 1]} : vector<2x128xf32> to vector<2x32xf32>
      %44 = vector.extract_strided_slice %39 {offsets = [0, 96], sizes = [2, 32], strides = [1, 1]} : vector<2x128xf32> to vector<2x32xf32>
      %45 = arith.mulf %43, %25 : vector<2x32xf32>
      %46 = arith.mulf %42, %41 : vector<2x32xf32>
      %47 = arith.addf %45, %46 : vector<2x32xf32>
      %48 = math.tanh %47 : vector<2x32xf32>
      %49 = arith.mulf %44, %48 : vector<2x32xf32>
      %c0_35 = arith.constant 0 : index
      %c0_36 = arith.constant 0 : index
      %c0_37 = arith.constant 0 : index
      %50 = vector.load %arg16[%c0_35, %c0_36, %c0_37] : memref<2x2x32xf32, #tpu.memory_space<vmem>>, vector<1x2x32xf32>
      %51 = vector.shape_cast %50 : vector<1x2x32xf32> to vector<2x32xf32>
      %52 = vector.shape_cast %49 : vector<2x32xf32> to vector<1x2x32xf32>
      tpu.vector_store %arg16[%c0_35, %c0_36, %c0_37], %52 {strides = array<i32>} : memref<2x2x32xf32, #tpu.memory_space<vmem>>, vector<1x2x32xf32>,
      %c0_38 = arith.constant 0 : index
      %c0_39 = arith.constant 0 : index
      %c0_40 = arith.constant 0 : index
      %53 = vector.load %arg17[%c0_38, %c0_39, %c0_40] : memref<2x2x32xf32, #tpu.memory_space<vmem>>, vector<1x2x32xf32>
      %54 = vector.shape_cast %53 : vector<1x2x32xf32> to vector<2x32xf32>
      %55 = vector.shape_cast %47 : vector<2x32xf32> to vector<1x2x32xf32>
      tpu.vector_store %arg17[%c0_38, %c0_39, %c0_40], %55 {strides = array<i32>} : memref<2x2x32xf32, #tpu.memory_space<vmem>>, vector<1x2x32xf32>,
      %c0_41 = arith.constant 0 : index
      %c0_42 = arith.constant 0 : index
      %56 = vector.load %arg14[%c0_41, %c0_42] : memref<1x128xf32, #tpu.memory_space<vmem>>, vector<1x128xf32>
      %c1 = arith.constant 1 : index
      %c0_43 = arith.constant 0 : index
      %c0_44 = arith.constant 0 : index
      %57 = vector.load %arg3[%c1, %c0_43, %c0_44] : memref<2x2x32xf32, #tpu.memory_space<vmem>>, vector<1x2x32xf32>
      %58 = vector.shape_cast %57 : vector<1x2x32xf32> to vector<2x32xf32>
      %c1_45 = arith.constant 1 : index
      %c0_46 = arith.constant 0 : index
      %c0_47 = arith.constant 0 : index
      %59 = vector.load %arg4[%c1_45, %c0_46, %c0_47] : memref<2x2x32xf32, #tpu.memory_space<vmem>>, vector<1x2x32xf32>
      %60 = vector.shape_cast %59 : vector<1x2x32xf32> to vector<2x32xf32>
      %61 = arith.truncf %49 : vector<2x32xf32> to vector<2x32xbf16>
      %c0_48 = arith.constant 0 : index
      %c0_49 = arith.constant 0 : index
      %62 = vector.load %arg12[%c0_48, %c0_49] : memref<32x128xbf16, #tpu.memory_space<vmem>>, vector<32x128xbf16>
      %cst_50 = arith.constant dense<0.000000e+00> : vector<2x128xf32>
      %63 = tpu.matmul %61, %62, %cst_50 {dimension_numbers = #tpu.dot_dimension_numbers<[1], [0], [0], [1], [0, 0, 1, 1], [], []>} : vector<2x32xbf16>, vector<32x128xbf16>, vector<2x128xf32> -> vector<2x128xf32>
      %64 = arith.truncf %58 : vector<2x32xf32> to vector<2x32xbf16>
      %c0_51 = arith.constant 0 : index
      %c0_52 = arith.constant 0 : index
      %65 = vector.load %arg13[%c0_51, %c0_52] : memref<32x128xbf16, #tpu.memory_space<vmem>>, vector<32x128xbf16>
      %cst_53 = arith.constant dense<0.000000e+00> : vector<2x128xf32>
      %66 = tpu.matmul %64, %65, %cst_53 {dimension_numbers = #tpu.dot_dimension_numbers<[1], [0], [0], [1], [0, 0, 1, 1], [], []>} : vector<2x32xbf16>, vector<32x128xbf16>, vector<2x128xf32> -> vector<2x128xf32>
      %67 = arith.addf %63, %66 : vector<2x128xf32>
      %68 = vector.broadcast %56 : vector<1x128xf32> to vector<2x128xf32>
      %69 = arith.addf %67, %68 : vector<2x128xf32>
      %70 = arith.negf %69 : vector<2x128xf32>
      %71 = math.exp %70 : vector<2x128xf32>
      %cst_54 = arith.constant 1.000000e+00 : f32
      %72 = vector.broadcast %cst_54 : f32 to vector<2x128xf32>
      %73 = arith.addf %72, %71 : vector<2x128xf32>
      %74 = arith.divf %72, %73 : vector<2x128xf32>
      %75 = vector.extract_strided_slice %69 {offsets = [0, 64], sizes = [2, 32], strides = [1, 1]} : vector<2x128xf32> to vector<2x32xf32>
      %76 = math.tanh %75 : vector<2x32xf32>
      %77 = vector.extract_strided_slice %74 {offsets = [0, 0], sizes = [2, 32], strides = [1, 1]} : vector<2x128xf32> to vector<2x32xf32>
      %78 = vector.extract_strided_slice %74 {offsets = [0, 32], sizes = [2, 32], strides = [1, 1]} : vector<2x128xf32> to vector<2x32xf32>
      %79 = vector.extract_strided_slice %74 {offsets = [0, 96], sizes = [2, 32], strides = [1, 1]} : vector<2x128xf32> to vector<2x32xf32>
      %80 = arith.mulf %78, %60 : vector<2x32xf32>
      %81 = arith.mulf %77, %76 : vector<2x32xf32>
      %82 = arith.addf %80, %81 : vector<2x32xf32>
      %83 = math.tanh %82 : vector<2x32xf32>
      %84 = arith.mulf %79, %83 : vector<2x32xf32>
      %c1_55 = arith.constant 1 : index
      %c0_56 = arith.constant 0 : index
      %c0_57 = arith.constant 0 : index
      %85 = vector.load %arg16[%c1_55, %c0_56, %c0_57] : memref<2x2x32xf32, #tpu.memory_space<vmem>>, vector<1x2x32xf32>
      %86 = vector.shape_cast %85 : vector<1x2x32xf32> to vector<2x32xf32>
      %87 = vector.shape_cast %84 : vector<2x32xf32> to vector<1x2x32xf32>
      tpu.vector_store %arg16[%c1_55, %c0_56, %c0_57], %87 {strides = array<i32>} : memref<2x2x32xf32, #tpu.memory_space<vmem>>, vector<1x2x32xf32>,
      %c1_58 = arith.constant 1 : index
      %c0_59 = arith.constant 0 : index
      %c0_60 = arith.constant 0 : index
      %88 = vector.load %arg17[%c1_58, %c0_59, %c0_60] : memref<2x2x32xf32, #tpu.memory_space<vmem>>, vector<1x2x32xf32>
      %89 = vector.shape_cast %88 : vector<1x2x32xf32> to vector<2x32xf32>
      %90 = vector.shape_cast %82 : vector<2x32xf32> to vector<1x2x32xf32>
      tpu.vector_store %arg17[%c1_58, %c0_59, %c0_60], %90 {strides = array<i32>} : memref<2x2x32xf32, #tpu.memory_space<vmem>>, vector<1x2x32xf32>,
    } else {
    }
    %c0 = arith.constant 0 : index
    %c0_1 = arith.constant 0 : index
    %3 = vector.load %arg18[%c0, %c0_1] : memref<2x32xf32, #tpu.memory_space<vmem>>, vector<2x32xf32>
    %4 = arith.truncf %3 : vector<2x32xf32> to vector<2x32xbf16>
    %c0_2 = arith.constant 0 : index
    %c0_3 = arith.constant 0 : index
    %5 = vector.load %arg7[%c0_2, %c0_3] : memref<32x128xbf16, #tpu.memory_space<vmem>>, vector<32x128xbf16>
    %cst = arith.constant dense<0.000000e+00> : vector<2x128xf32>
    %6 = tpu.matmul %4, %5, %cst {dimension_numbers = #tpu.dot_dimension_numbers<[1], [0], [0], [1], [0, 0, 1, 1], [], []>} : vector<2x32xbf16>, vector<32x128xbf16>, vector<2x128xf32> -> vector<2x128xf32>
    %c0_4 = arith.constant 0 : index
    %c0_5 = arith.constant 0 : index
    %7 = vector.load %arg8[%c0_4, %c0_5] : memref<1x128xf32, #tpu.memory_space<vmem>>, vector<1x128xf32>
    %8 = vector.broadcast %7 : vector<1x128xf32> to vector<2x128xf32>
    %9 = arith.addf %6, %8 : vector<2x128xf32>
    %c0_6 = arith.constant 0 : index
    %c0_7 = arith.constant 0 : index
    %10 = vector.load %arg15[%c0_6, %c0_7] : memref<2x128xf32, #tpu.memory_space<vmem>>, vector<2x128xf32>
    tpu.vector_store %arg15[%c0_6, %c0_7], %9 {strides = array<i32>} : memref<2x128xf32, #tpu.memory_space<vmem>>, vector<2x128xf32>,
    return
  }
  func.func @transform_0(%arg0: i32) -> (i32, i32) {
    %c0_i32 = arith.constant 0 : i32
    %c0_i32_0 = arith.constant 0 : i32
    %c0_i32_1 = arith.constant 0 : i32
    return %c0_i32, %c0_i32_0 : i32, i32
  }
  func.func @transform_1(%arg0: i32) -> (i32, i32) {
    %c0_i32 = arith.constant 0 : i32
    %c0_i32_0 = arith.constant 0 : i32
    %c0_i32_1 = arith.constant 0 : i32
    return %c0_i32, %c0_i32_0 : i32, i32
  }
  func.func @transform_2(%arg0: i32) -> (i32, i32, i32) {
    %c0_i32 = arith.constant 0 : i32
    %c0_i32_0 = arith.constant 0 : i32
    %c0_i32_1 = arith.constant 0 : i32
    %c0_i32_2 = arith.constant 0 : i32
    return %c0_i32, %c0_i32_0, %c0_i32_1 : i32, i32, i32
  }
  func.func @transform_3(%arg0: i32) -> (i32, i32, i32) {
    %c0_i32 = arith.constant 0 : i32
    %c0_i32_0 = arith.constant 0 : i32
    %c0_i32_1 = arith.constant 0 : i32
    %c0_i32_2 = arith.constant 0 : i32
    return %c0_i32, %c0_i32_0, %c0_i32_1 : i32, i32, i32
  }
  func.func @transform_4(%arg0: i32) -> (i32, i32) {
    %c0_i32 = arith.constant 0 : i32
    %c0_i32_0 = arith.constant 0 : i32
    %c0_i32_1 = arith.constant 0 : i32
    return %c0_i32, %c0_i32_0 : i32, i32
  }
  func.func @transform_5(%arg0: i32) -> (i32, i32) {
    %c0_i32 = arith.constant 0 : i32
    %c0_i32_0 = arith.constant 0 : i32
    %c0_i32_1 = arith.constant 0 : i32
    return %c0_i32, %c0_i32_0 : i32, i32
  }
  func.func @transform_6(%arg0: i32) -> (i32, i32) {
    %c0_i32 = arith.constant 0 : i32
    %c0_i32_0 = arith.constant 0 : i32
    return %c0_i32, %arg0 : i32, i32
  }
  func.func @transform_7(%arg0: i32) -> (i32, i32) {
    %c0_i32 = arith.constant 0 : i32
    %c0_i32_0 = arith.constant 0 : i32
    return %c0_i32, %arg0 : i32, i32
  }
  func.func @transform_8(%arg0: i32) -> (i32, i32) {
    %c0_i32 = arith.constant 0 : i32
    %c0_i32_0 = arith.constant 0 : i32
    %c0_i32_1 = arith.constant 0 : i32
    return %c0_i32, %c0_i32_0 : i32, i32
  }
  func.func @transform_9(%arg0: i32) -> (i32, i32) {
    %c0_i32 = arith.constant 0 : i32
    %c0_i32_0 = arith.constant 0 : i32
    %c0_i32_1 = arith.constant 0 : i32
    return %c0_i32, %c0_i32_0 : i32, i32
  }
  func.func @transform_10(%arg0: i32) -> (i32, i32) {
    %c0_i32 = arith.constant 0 : i32
    %c0_i32_0 = arith.constant 0 : i32
    %c0_i32_1 = arith.constant 0 : i32
    return %c0_i32, %c0_i32_0 : i32, i32
  }
  func.func @transform_11(%arg0: i32) -> (i32, i32) {
    %c0_i32 = arith.constant 0 : i32
    %c0_i32_0 = arith.constant 0 : i32
    %c0_i32_1 = arith.constant 0 : i32
    return %c0_i32, %c0_i32_0 : i32, i32
  }
  func.func @transform_12(%arg0: i32) -> (i32, i32) {
    %c0_i32 = arith.constant 0 : i32
    %c0_i32_0 = arith.constant 0 : i32
    %c0_i32_1 = arith.constant 0 : i32
    return %c0_i32, %c0_i32_0 : i32, i32
  }
  func.func @transform_13(%arg0: i32) -> (i32, i32) {
    %c0_i32 = arith.constant 0 : i32
    %c0_i32_0 = arith.constant 0 : i32
    %c0_i32_1 = arith.constant 0 : i32
    return %c0_i32, %c0_i32_0 : i32, i32
  }
  func.func @transform_14(%arg0: i32) -> (i32, i32) {
    %c0_i32 = arith.constant 0 : i32
    %c0_i32_0 = arith.constant 0 : i32
    return %c0_i32, %arg0 : i32, i32
  }
  func.func @transform_15(%arg0: i32) -> (i32, i32, i32) {
    %c0_i32 = arith.constant 0 : i32
    %c0_i32_0 = arith.constant 0 : i32
    %c0_i32_1 = arith.constant 0 : i32
    %c0_i32_2 = arith.constant 0 : i32
    return %c0_i32, %c0_i32_0, %c0_i32_1 : i32, i32, i32
  }
  func.func @transform_16(%arg0: i32) -> (i32, i32, i32) {
    %c0_i32 = arith.constant 0 : i32
    %c0_i32_0 = arith.constant 0 : i32
    %c0_i32_1 = arith.constant 0 : i32
    %c0_i32_2 = arith.constant 0 : i32
    return %c0_i32, %c0_i32_0, %c0_i32_1 : i32, i32, i32
  }
}

</mosaic_0001>

<llo_original>
// kernel: decoder_forward.1
$region0: #{decoder_forward.1}
  #allocation0 [shape = 'u32[]', space=smem, size = 0x4, offset = 0x4, fixed_abs, tag = 'smem constant byte address 0x4 - core index']
  #allocation1 [shape = 'u32[144,128]{1,0:T(1,128)}', space=vmem, size = 0x12000, scoped, tag = 'internal scratch']
  #allocation2 [shape = 'f32[2,32]{1,0:T(2,128)}', space=vmem, size = 0x400, scoped, tag = 'scratch operand']
  %s0 = inlined_call_operand.hbm [shape: f32[2,32], index: 0, kind: input, shape index: {}]
  %s1 = inlined_call_operand.hbm [shape: f32[2,16], index: 1, kind: input, shape index: {}]
  %s2 = inlined_call_operand.hbm [shape: f32[2,2,32], index: 2, kind: input, shape index: {}]
  %s3 = inlined_call_operand.hbm [shape: f32[2,2,32], index: 3, kind: input, shape index: {}]
  %s4 = inlined_call_operand.hbm [shape: f32[32,32], index: 4, kind: input, shape index: {}]
  %s5 = inlined_call_operand.hbm [shape: f32[1,32], index: 5, kind: input, shape index: {}]
  %s6 = inlined_call_operand.vmem [shape: bf16[32,384], index: 6, kind: input, shape index: {}]
  %s7 = inlined_call_operand.hbm [shape: f32[1,384], index: 7, kind: input, shape index: {}]
  %s8 = inlined_call_operand.hbm [shape: bf16[16,128], index: 8, kind: input, shape index: {}]
  %s9 = inlined_call_operand.vmem [shape: bf16[32,128], index: 9, kind: input, shape index: {}]
  %s10 = inlined_call_operand.hbm [shape: f32[1,128], index: 10, kind: input, shape index: {}]
  %s11 = inlined_call_operand.hbm [shape: bf16[32,128], index: 11, kind: input, shape index: {}]
  %s12 = inlined_call_operand.hbm [shape: bf16[32,128], index: 12, kind: input, shape index: {}]
  %s13 = inlined_call_operand.hbm [shape: f32[1,128], index: 13, kind: input, shape index: {}]
  %s14 = inlined_call_operand.hbm [shape: f32[2,384], index: 14, kind: output, shape index: {0}]
  %s15 = inlined_call_operand.vmem [shape: f32[2,2,32], index: 15, kind: output, shape index: {1}]
  %s16 = inlined_call_operand.hbm [shape: f32[2,2,32], index: 16, kind: output, shape index: {2}]
  %17 = xla_tuple %s14, %s15, %s16
  %s18 = sld [smem:[#allocation0]]
  $region198: #{decoder_forward.1} parent=0
    _
  %s20 = ssub.s32 1, %s18
  %s21 = scalar_select 0, %s20, %s18
  $region1: #{decoder_forward.1} parent=0
    #allocation3 [shape = 'u8[1024]{0}', space=vmem, size = 0x400, scoped, tag = 'input window, operand 0, single buffered']
    #allocation4 [shape = 's32[2]{0}', space=sflag, size = 0x8, scoped, tag = 'scoped memory for decoder_forward.1']
    #allocation5 [shape = 's32[2]{0}', space=sflag, size = 0x8, scoped, tag = 'scoped memory for decoder_forward.1']
    #allocation6 [shape = 'u8[1024]{0}', space=vmem, size = 0x400, scoped, tag = 'input window, operand 1, single buffered']
    #allocation7 [shape = 's32[1]{0}', space=sflag, size = 0x4, scoped, tag = 'scoped memory for decoder_forward.1']
    #allocation8 [shape = 'u8[2048]{0}', space=vmem, size = 0x800, scoped, tag = 'input window, operand 2, single buffered']
    #allocation9 [shape = 'u8[2048]{0}', space=vmem, size = 0x800, scoped, tag = 'input window, operand 3, single buffered']
    #allocation10 [shape = 's32[1]{0}', space=sflag, size = 0x4, scoped, tag = 'scoped memory for decoder_forward.1']
    #allocation11 [shape = 'u8[16384]{0}', space=vmem, size = 0x4000, scoped, tag = 'input window, operand 4, single buffered']
    #allocation12 [shape = 'u8[512]{0}', space=vmem, size = 0x400, scoped, tag = 'input window, operand 5, single buffered']
    #allocation13 [shape = 's32[1]{0}', space=sflag, size = 0x4, scoped, tag = 'scoped memory for decoder_forward.1']
    #allocation14 [shape = 'u8[16384]{0}', space=vmem, size = 0x4000, scoped, tag = 'input window, operand 6']
    #allocation15 [shape = 'u8[1024]{0}', space=vmem, size = 0x400, scoped, tag = 'input window, operand 7']
    #allocation16 [shape = 'u8[4096]{0}', space=vmem, size = 0x1000, scoped, tag = 'input window, operand 8, single buffered']
    #allocation17 [shape = 'u8[512]{0}', space=vmem, size = 0x400, scoped, tag = 'input window, operand 10, single buffered']
    #allocation18 [shape = 'u8[8192]{0}', space=vmem, size = 0x2000, scoped, tag = 'input window, operand 11, single buffered']
    #allocation19 [shape = 'u8[8192]{0}', space=vmem, size = 0x2000, scoped, tag = 'input window, operand 12, single buffered']
    #allocation20 [shape = 's32[1]{0}', space=sflag, size = 0x4, scoped, tag = 'scoped memory for decoder_forward.1']
    #allocation21 [shape = 'u8[512]{0}', space=vmem, size = 0x400, scoped, tag = 'input window, operand 13, single buffered']
    #allocation22 [shape = 'u8[2048]{0}', space=vmem, size = 0x800, scoped, tag = 'output window, operand 0']
    #allocation23 [shape = 'u8[2048]{0}', space=vmem, size = 0x800, scoped, tag = 'output window, operand 2, single buffered']
    #allocation24 [shape = 's32[1]{0}', space=sflag, size = 0x4, scoped, tag = 'scoped memory for decoder_forward.1']
    %22 = vsyncpa [#allocation4], 0
    %23 = vsyncpa [#allocation7], 0
    %24 = vsyncpa [#allocation10], 0
    %25 = vsyncpa [#allocation13], 0
    %26 = vsyncpa [#allocation20], 0
    %27 = vsyncpa [#allocation5], 0
    %s28 = scalar_lea.sflag [#allocation5], 1
    %29 = vsyncpa %s28, 0
    %30 = vsyncpa [#allocation24], 0
    loop: start=0, step=1, limit=5
    $region2: #{decoder_forward.1} parent=1 // loop_pre_header
      _
    $region3: #{decoder_forward.1} parent=1 // loop_header
      %s32 = sphi 0, %s36
      %p33 = scmp.ge.s32.totalorder %s32, 5
      %s40 = sphi 0, %s40
      %s42 = sphi 0, %s40
      %s43 = sphi 0, %s42
      %s57 = sphi 0, %s43
      %s61 = sphi 0, %s61
      %s63 = sphi 0, %s61
      %s64 = sphi 0, %s63
      %s78 = sphi 0, %s64
      %s82 = sphi 0, %s82
      %s84 = sphi 0, %s82
      %s85 = sphi 0, %s84
      %s99 = sphi 0, %s85
      %s103 = sphi 0, %s103
      %s105 = sphi 0, %s103
      %s106 = sphi 0, %s105
      %s120 = sphi 0, %s106
      %s124 = sphi 0, %s124
      %s126 = sphi 0, %s124
      %s127 = sphi 0, %s126
      %s141 = sphi 0, %s127
      %s145 = sphi 0, %s145
      %s147 = sphi 0, %s145
      %s148 = sphi 0, %s147
      %s162 = sphi 0, %s148
      %s168 = sphi 0, %s170
      %s171 = sphi 0, %s168
      %s172 = sphi 0, %s171
      %s188 = sphi 0, %s172
      %s194 = sphi 0, %s196
      %s197 = sphi 0, %s194
      %s198 = sphi 0, %s197
      %s214 = sphi 0, %s198
      %s218 = sphi 0, %s218
      %s220 = sphi 0, %s218
      %s221 = sphi 0, %s220
      %s235 = sphi 0, %s221
      %s239 = sphi 0, %s239
      %s241 = sphi 0, %s239
      %s242 = sphi 0, %s241
      %s256 = sphi 0, %s242
      %s260 = sphi 0, %s260
      %s262 = sphi 0, %s260
      %s263 = sphi 0, %s262
      %s277 = sphi 0, %s263
      %s281 = sphi 0, %s281
      %s283 = sphi 0, %s281
      %s284 = sphi 0, %s283
      %s298 = sphi 0, %s284
      %s302 = sphi 0, %s302
      %s304 = sphi 0, %s302
      %s305 = sphi 0, %s304
      %s319 = sphi 0, %s305
      %s323 = sphi 0, %s323
      %s325 = sphi 0, %s323
      %s326 = sphi 0, %s325
      %s340 = sphi 0, %s326
      %s346 = sphi 0, %s348
      %s349 = sphi 0, %s346
      %s350 = sphi 0, %s349
      %s366 = sphi 0, %s350
      %s370 = sphi 0, %s370
      %s372 = sphi 0, %s370
      %s373 = sphi 0, %s372
      %s387 = sphi 0, %s373
      %s391 = sphi 0, %s391
      %s393 = sphi 0, %s391
      %s394 = sphi 0, %s393
      %s408 = sphi 0, %s394
    $region4: #{decoder_forward.1} parent=1 // loop_header_branch
      %35 = sbr.rel (%p33) target = $region8
    $region5: #{decoder_forward.1} parent=1 // loop_body
      %s37 = ssub.s32 %s32, 1
      %s38 = ssub.s32 %s32, 2
      %s39 = sadd.s32 %s32, 1
      %s41 = sadd.s32 %s40, 1
      %p44 = scmp.eq.s32.totalorder %s32, 2
      %p45 = scmp.ne.s32.totalorder %s40, %s42
      %p46 = scmp.eq.s32.totalorder %s32, 0
      %p47 = por %p45, %p46
      %p48 = scmp.ne.s32.totalorder %s40, %s42
      %p49 = scmp.eq.s32.totalorder %s37, 2
      %p50 = por %p48, %p49
      %p51 = scmp.ne.s32.totalorder %s42, %s43
      %p52 = scmp.eq.s32.totalorder %s37, 0
      %p53 = por %p51, %p52
      %p54 = scmp.ne.s32.totalorder %s42, %s43
      %p55 = scmp.eq.s32.totalorder %s38, 2
      %p56 = por %p54, %p55
      %p58 = scmp.ne.s32.totalorder %s43, %s57
      %p59 = scmp.eq.s32.totalorder %s38, 0
      %p60 = por %p58, %p59
      %s62 = sadd.s32 %s61, 1
      %p65 = scmp.eq.s32.totalorder %s32, 2
      %p66 = scmp.ne.s32.totalorder %s61, %s63
      %p67 = scmp.eq.s32.totalorder %s32, 0
      %p68 = por %p66, %p67
      %p69 = scmp.ne.s32.totalorder %s61, %s63
      %p70 = scmp.eq.s32.totalorder %s37, 2
      %p71 = por %p69, %p70
      %p72 = scmp.ne.s32.totalorder %s63, %s64
      %p73 = scmp.eq.s32.totalorder %s37, 0
      %p74 = por %p72, %p73
      %p75 = scmp.ne.s32.totalorder %s63, %s64
      %p76 = scmp.eq.s32.totalorder %s38, 2
      %p77 = por %p75, %p76
      %p79 = scmp.ne.s32.totalorder %s64, %s78
      %p80 = scmp.eq.s32.totalorder %s38, 0
      %p81 = por %p79, %p80
      %s83 = sadd.s32 %s82, 1
      %p86 = scmp.eq.s32.totalorder %s32, 2
      %p87 = scmp.ne.s32.totalorder %s82, %s84
      %p88 = scmp.eq.s32.totalorder %s32, 0
      %p89 = por %p87, %p88
      %p90 = scmp.ne.s32.totalorder %s82, %s84
      %p91 = scmp.eq.s32.totalorder %s37, 2
      %p92 = por %p90, %p91
      %p93 = scmp.ne.s32.totalorder %s84, %s85
      %p94 = scmp.eq.s32.totalorder %s37, 0
      %p95 = por %p93, %p94
      %p96 = scmp.ne.s32.totalorder %s84, %s85
      %p97 = scmp.eq.s32.totalorder %s38, 2
      %p98 = por %p96, %p97
      %p100 = scmp.ne.s32.totalorder %s85, %s99
      %p101 = scmp.eq.s32.totalorder %s38, 0
      %p102 = por %p100, %p101
      %s104 = sadd.s32 %s103, 1
      %p107 = scmp.eq.s32.totalorder %s32, 2
      %p108 = scmp.ne.s32.totalorder %s103, %s105
      %p109 = scmp.eq.s32.totalorder %s32, 0
      %p110 = por %p108, %p109
      %p111 = scmp.ne.s32.totalorder %s103, %s105
      %p112 = scmp.eq.s32.totalorder %s37, 2
      %p113 = por %p111, %p112
      %p114 = scmp.ne.s32.totalorder %s105, %s106
      %p115 = scmp.eq.s32.totalorder %s37, 0
      %p116 = por %p114, %p115
      %p117 = scmp.ne.s32.totalorder %s105, %s106
      %p118 = scmp.eq.s32.totalorder %s38, 2
      %p119 = por %p117, %p118
      %p121 = scmp.ne.s32.totalorder %s106, %s120
      %p122 = scmp.eq.s32.totalorder %s38, 0
      %p123 = por %p121, %p122
      %s125 = sadd.s32 %s124, 1
      %p128 = scmp.eq.s32.totalorder %s32, 2
      %p129 = scmp.ne.s32.totalorder %s124, %s126
      %p130 = scmp.eq.s32.totalorder %s32, 0
      %p131 = por %p129, %p130
      %p132 = scmp.ne.s32.totalorder %s124, %s126
      %p133 = scmp.eq.s32.totalorder %s37, 2
      %p134 = por %p132, %p133
      %p135 = scmp.ne.s32.totalorder %s126, %s127
      %p136 = scmp.eq.s32.totalorder %s37, 0
      %p137 = por %p135, %p136
      %p138 = scmp.ne.s32.totalorder %s126, %s127
      %p139 = scmp.eq.s32.totalorder %s38, 2
      %p140 = por %p138, %p139
      %p142 = scmp.ne.s32.totalorder %s127, %s141
      %p143 = scmp.eq.s32.totalorder %s38, 0
      %p144 = por %p142, %p143
      %s146 = sadd.s32 %s145, 1
      %p149 = scmp.eq.s32.totalorder %s32, 2
      %p150 = scmp.ne.s32.totalorder %s145, %s147
      %p151 = scmp.eq.s32.totalorder %s32, 0
      %p152 = por %p150, %p151
      %p153 = scmp.ne.s32.totalorder %s145, %s147
      %p154 = scmp.eq.s32.totalorder %s37, 2
      %p155 = por %p153, %p154
      %p156 = scmp.ne.s32.totalorder %s147, %s148
      %p157 = scmp.eq.s32.totalorder %s37, 0
      %p158 = por %p156, %p157
      %p159 = scmp.ne.s32.totalorder %s147, %s148
      %p160 = scmp.eq.s32.totalorder %s38, 2
      %p161 = por %p159, %p160
      %p163 = scmp.ne.s32.totalorder %s148, %s162
      %p164 = scmp.eq.s32.totalorder %s38, 0
      %p165 = por %p163, %p164
      %s166 = ssub.s32 %s32, %s39
      %p167 = scmp.eq.s32.totalorder %s166, 0
      %s169 = sadd.s32 %s168, 1
      %s170 = scalar_select %p167, %s168, %s169
      %p173 = pneg %p167
      %p174 = scmp.eq.s32.totalorder %s32, 2
      %p175 = por %p173, %p174
      %p176 = scmp.ne.s32.totalorder %s168, %s171
      %p177 = scmp.eq.s32.totalorder %s32, 0
      %p178 = por %p176, %p177
      %p179 = scmp.ne.s32.totalorder %s168, %s171
      %p180 = scmp.eq.s32.totalorder %s37, 2
      %p181 = por %p179, %p180
      %p182 = scmp.ne.s32.totalorder %s171, %s172
      %p183 = scmp.eq.s32.totalorder %s37, 0
      %p184 = por %p182, %p183
      %p185 = scmp.ne.s32.totalorder %s171, %s172
      %p186 = scmp.eq.s32.totalorder %s38, 2
      %p187 = por %p185, %p186
      %p189 = scmp.ne.s32.totalorder %s172, %s188
      %p190 = scmp.eq.s32.totalorder %s38, 0
      %p191 = por %p189, %p190
      %s192 = ssub.s32 %s32, %s39
      %p193 = scmp.eq.s32.totalorder %s192, 0
      %s195 = sadd.s32 %s194, 1
      %s196 = scalar_select %p193, %s194, %s195
      %p199 = pneg %p193
      %p200 = scmp.eq.s32.totalorder %s32, 2
      %p201 = por %p199, %p200
      %p202 = scmp.ne.s32.totalorder %s194, %s197
      %p203 = scmp.eq.s32.totalorder %s32, 0
      %p204 = por %p202, %p203
      %p205 = scmp.ne.s32.totalorder %s194, %s197
      %p206 = scmp.eq.s32.totalorder %s37, 2
      %p207 = por %p205, %p206
      %p208 = scmp.ne.s32.totalorder %s197, %s198
      %p209 = scmp.eq.s32.totalorder %s37, 0
      %p210 = por %p208, %p209
      %p211 = scmp.ne.s32.totalorder %s197, %s198
      %p212 = scmp.eq.s32.totalorder %s38, 2
      %p213 = por %p211, %p212
      %p215 = scmp.ne.s32.totalorder %s198, %s214
      %p216 = scmp.eq.s32.totalorder %s38, 0
      %p217 = por %p215, %p216
      %s219 = sadd.s32 %s218, 1
      %p222 = scmp.eq.s32.totalorder %s32, 2
      %p223 = scmp.ne.s32.totalorder %s218, %s220
      %p224 = scmp.eq.s32.totalorder %s32, 0
      %p225 = por %p223, %p224
      %p226 = scmp.ne.s32.totalorder %s218, %s220
      %p227 = scmp.eq.s32.totalorder %s37, 2
      %p228 = por %p226, %p227
      %p229 = scmp.ne.s32.totalorder %s220, %s221
      %p230 = scmp.eq.s32.totalorder %s37, 0
      %p231 = por %p229, %p230
      %p232 = scmp.ne.s32.totalorder %s220, %s221
      %p233 = scmp.eq.s32.totalorder %s38, 2
      %p234 = por %p232, %p233
      %p236 = scmp.ne.s32.totalorder %s221, %s235
      %p237 = scmp.eq.s32.totalorder %s38, 0
      %p238 = por %p236, %p237
      %s240 = sadd.s32 %s239, 1
      %p243 = scmp.eq.s32.totalorder %s32, 2
      %p244 = scmp.ne.s32.totalorder %s239, %s241
      %p245 = scmp.eq.s32.totalorder %s32, 0
      %p246 = por %p244, %p245
      %p247 = scmp.ne.s32.totalorder %s239, %s241
      %p248 = scmp.eq.s32.totalorder %s37, 2
      %p249 = por %p247, %p248
      %p250 = scmp.ne.s32.totalorder %s241, %s242
      %p251 = scmp.eq.s32.totalorder %s37, 0
      %p252 = por %p250, %p251
      %p253 = scmp.ne.s32.totalorder %s241, %s242
      %p254 = scmp.eq.s32.totalorder %s38, 2
      %p255 = por %p253, %p254
      %p257 = scmp.ne.s32.totalorder %s242, %s256
      %p258 = scmp.eq.s32.totalorder %s38, 0
      %p259 = por %p257, %p258
      %s261 = sadd.s32 %s260, 1
      %p264 = scmp.eq.s32.totalorder %s32, 2
      %p265 = scmp.ne.s32.totalorder %s260, %s262
      %p266 = scmp.eq.s32.totalorder %s32, 0
      %p267 = por %p265, %p266
      %p268 = scmp.ne.s32.totalorder %s260, %s262
      %p269 = scmp.eq.s32.totalorder %s37, 2
      %p270 = por %p268, %p269
      %p271 = scmp.ne.s32.totalorder %s262, %s263
      %p272 = scmp.eq.s32.totalorder %s37, 0
      %p273 = por %p271, %p272
      %p274 = scmp.ne.s32.totalorder %s262, %s263
      %p275 = scmp.eq.s32.totalorder %s38, 2
      %p276 = por %p274, %p275
      %p278 = scmp.ne.s32.totalorder %s263, %s277
      %p279 = scmp.eq.s32.totalorder %s38, 0
      %p280 = por %p278, %p279
      %s282 = sadd.s32 %s281, 1
      %p285 = scmp.eq.s32.totalorder %s32, 2
      %p286 = scmp.ne.s32.totalorder %s281, %s283
      %p287 = scmp.eq.s32.totalorder %s32, 0
      %p288 = por %p286, %p287
      %p289 = scmp.ne.s32.totalorder %s281, %s283
      %p290 = scmp.eq.s32.totalorder %s37, 2
      %p291 = por %p289, %p290
      %p292 = scmp.ne.s32.totalorder %s283, %s284
      %p293 = scmp.eq.s32.totalorder %s37, 0
      %p294 = por %p292, %p293
      %p295 = scmp.ne.s32.totalorder %s283, %s284
      %p296 = scmp.eq.s32.totalorder %s38, 2
      %p297 = por %p295, %p296
      %p299 = scmp.ne.s32.totalorder %s284, %s298
      %p300 = scmp.eq.s32.totalorder %s38, 0
      %p301 = por %p299, %p300
      %s303 = sadd.s32 %s302, 1
      %p306 = scmp.eq.s32.totalorder %s32, 2
      %p307 = scmp.ne.s32.totalorder %s302, %s304
      %p308 = scmp.eq.s32.totalorder %s32, 0
      %p309 = por %p307, %p308
      %p310 = scmp.ne.s32.totalorder %s302, %s304
      %p311 = scmp.eq.s32.totalorder %s37, 2
      %p312 = por %p310, %p311
      %p313 = scmp.ne.s32.totalorder %s304, %s305
      %p314 = scmp.eq.s32.totalorder %s37, 0
      %p315 = por %p313, %p314
      %p316 = scmp.ne.s32.totalorder %s304, %s305
      %p317 = scmp.eq.s32.totalorder %s38, 2
      %p318 = por %p316, %p317
      %p320 = scmp.ne.s32.totalorder %s305, %s319
      %p321 = scmp.eq.s32.totalorder %s38, 0
      %p322 = por %p320, %p321
      %s324 = sadd.s32 %s323, 1
      %p327 = scmp.eq.s32.totalorder %s32, 2
      %p328 = scmp.ne.s32.totalorder %s323, %s325
      %p329 = scmp.eq.s32.totalorder %s32, 0
      %p330 = por %p328, %p329
      %p331 = scmp.ne.s32.totalorder %s323, %s325
      %p332 = scmp.eq.s32.totalorder %s37, 2
      %p333 = por %p331, %p332
      %p334 = scmp.ne.s32.totalorder %s325, %s326
      %p335 = scmp.eq.s32.totalorder %s37, 0
      %p336 = por %p334, %p335
      %p337 = scmp.ne.s32.totalorder %s325, %s326
      %p338 = scmp.eq.s32.totalorder %s38, 2
      %p339 = por %p337, %p338
      %p341 = scmp.ne.s32.totalorder %s326, %s340
      %p342 = scmp.eq.s32.totalorder %s38, 0
      %p343 = por %p341, %p342
      %s344 = ssub.s32 %s32, %s39
      %p345 = scmp.eq.s32.totalorder %s344, 0
      %s347 = sadd.s32 %s346, 1
      %s348 = scalar_select %p345, %s346, %s347
      %p351 = pneg %p345
      %p352 = scmp.eq.s32.totalorder %s32, 2
      %p353 = por %p351, %p352
      %p354 = scmp.ne.s32.totalorder %s346, %s349
      %p355 = scmp.eq.s32.totalorder %s32, 0
      %p356 = por %p354, %p355
      %p357 = scmp.ne.s32.totalorder %s346, %s349
      %p358 = scmp.eq.s32.totalorder %s37, 2
      %p359 = por %p357, %p358
      %p360 = scmp.ne.s32.totalorder %s349, %s350
      %p361 = scmp.eq.s32.totalorder %s37, 0
      %p362 = por %p360, %p361
      %p363 = scmp.ne.s32.totalorder %s349, %s350
      %p364 = scmp.eq.s32.totalorder %s38, 2
      %p365 = por %p363, %p364
      %p367 = scmp.ne.s32.totalorder %s350, %s366
      %p368 = scmp.eq.s32.totalorder %s38, 0
      %p369 = por %p367, %p368
      %s371 = sadd.s32 %s370, 1
      %p374 = scmp.eq.s32.totalorder %s32, 2
      %p375 = scmp.ne.s32.totalorder %s370, %s372
      %p376 = scmp.eq.s32.totalorder %s32, 0
      %p377 = por %p375, %p376
      %p378 = scmp.ne.s32.totalorder %s370, %s372
      %p379 = scmp.eq.s32.totalorder %s37, 2
      %p380 = por %p378, %p379
      %p381 = scmp.ne.s32.totalorder %s372, %s373
      %p382 = scmp.eq.s32.totalorder %s37, 0
      %p383 = por %p381, %p382
      %p384 = scmp.ne.s32.totalorder %s372, %s373
      %p385 = scmp.eq.s32.totalorder %s38, 2
      %p386 = por %p384, %p385
      %p388 = scmp.ne.s32.totalorder %s373, %s387
      %p389 = scmp.eq.s32.totalorder %s38, 0
      %p390 = por %p388, %p389
      %s392 = sadd.s32 %s391, 1
      %p395 = scmp.eq.s32.totalorder %s32, 2
      %p396 = scmp.ne.s32.totalorder %s391, %s393
      %p397 = scmp.eq.s32.totalorder %s32, 0
      %p398 = por %p396, %p397
      %p399 = scmp.ne.s32.totalorder %s391, %s393
      %p400 = scmp.eq.s32.totalorder %s37, 2
      %p401 = por %p399, %p400
      %p402 = scmp.ne.s32.totalorder %s393, %s394
      %p403 = scmp.eq.s32.totalorder %s37, 0
      %p404 = por %p402, %p403
      %p405 = scmp.ne.s32.totalorder %s393, %s394
      %p406 = scmp.eq.s32.totalorder %s38, 2
      %p407 = por %p405, %p406
      %p409 = scmp.ne.s32.totalorder %s394, %s408
      %p410 = scmp.eq.s32.totalorder %s38, 0
      %p411 = por %p409, %p410
      %p412 = scmp.le.s32.totalorder 1, %s32
      %p413 = scmp.lt.s32.totalorder %s32, 4
      %p414 = pnand %p412, %p413
      %p415 = pneg %p414
      // Predicated region
      $region9: #{decoder_forward.1} parent=5 // pred_check
        _
      $region10: #{decoder_forward.1} parent=5 // pred_check_branch
        %417 = sbr.rel (%p414) target = $region12
      $region11: #{decoder_forward.1} parent=5 // pred_region
        %s418 = ssub.s32 %s32, 1
        // Predicated region
        $region13: #{decoder_forward.1} parent=11 // pred_check
          %p419 = pneg %p53
        $region14: #{decoder_forward.1} parent=11 // pred_check_branch
          %421 = sbr.rel (%p419) target = $region16
        $region15: #{decoder_forward.1} parent=11 // pred_region
          %s423 = ssub.s32 32, 32
          %424 = vsyncadd [#allocation4], %s423
          %s426 = sshll.u32 [#allocation3], 4
          %s427 = int_to_ptr.vmem [resolvable:$true] %s426
          %429 = dma.hbm_to_vmem [thread:$0]  %s0, 32, %s427, [#allocation4]
        $region16: #{decoder_forward.1} parent=11 // pred_fallthru
          _
        // Predicated region
        $region17: #{decoder_forward.1} parent=11 // pred_check
          %p430 = pneg %p74
        $region18: #{decoder_forward.1} parent=11 // pred_check_branch
          %432 = sbr.rel (%p430) target = $region20
        $region19: #{decoder_forward.1} parent=11 // pred_region
          %s434 = ssub.s32 32, 32
          %435 = vsyncadd [#allocation7], %s434
          %s437 = sshll.u32 [#allocation6], 4
          %s438 = int_to_ptr.vmem [resolvable:$true] %s437
          %440 = dma.hbm_to_vmem [thread:$0]  %s1, 32, %s438, [#allocation7]
        $region20: #{decoder_forward.1} parent=11 // pred_fallthru
          _
        // Predicated region
        $region21: #{decoder_forward.1} parent=11 // pred_check
          %p441 = pneg %p95
        $region22: #{decoder_forward.1} parent=11 // pred_check_branch
          %443 = sbr.rel (%p441) target = $region24
        $region23: #{decoder_forward.1} parent=11 // pred_region
          %s445 = ssub.s32 64, 64
          %446 = vsyncadd [#allocation7], %s445
          %s447 = sshll.u32 [#allocation8], 4
          %s448 = int_to_ptr.vmem [resolvable:$true] %s447
          %453 = dma.hbm_to_vmem [thread:$0]  %s2, 64, %s448, [#allocation7], 32, 32, 2
        $region24: #{decoder_forward.1} parent=11 // pred_fallthru
          _
        // Predicated region
        $region25: #{decoder_forward.1} parent=11 // pred_check
          %p454 = pneg %p116
        $region26: #{decoder_forward.1} parent=11 // pred_check_branch
          %456 = sbr.rel (%p454) target = $region28
        $region27: #{decoder_forward.1} parent=11 // pred_region
          %s458 = ssub.s32 64, 64
          %459 = vsyncadd [#allocation10], %s458
          %s460 = sshll.u32 [#allocation9], 4
          %s461 = int_to_ptr.vmem [resolvable:$true] %s460
          %466 = dma.hbm_to_vmem [thread:$0]  %s3, 64, %s461, [#allocation10], 32, 32, 2
        $region28: #{decoder_forward.1} parent=11 // pred_fallthru
          _
        // Predicated region
        $region29: #{decoder_forward.1} parent=11 // pred_check
          %p467 = pneg %p137
        $region30: #{decoder_forward.1} parent=11 // pred_check_branch
          %469 = sbr.rel (%p467) target = $region32
        $region31: #{decoder_forward.1} parent=11 // pred_region
          %s471 = ssub.s32 512, 512
          %472 = vsyncadd [#allocation10], %s471
          %s473 = sshll.u32 [#allocation11], 4
          %s474 = int_to_ptr.vmem [resolvable:$true] %s473
          %479 = dma.hbm_to_vmem [thread:$0]  %s4, 512, %s474, [#allocation10], 128, 128, 8
        $region32: #{decoder_forward.1} parent=11 // pred_fallthru
          _
        // Predicated region
        $region33: #{decoder_forward.1} parent=11 // pred_check
          %p480 = pneg %p158
        $region34: #{decoder_forward.1} parent=11 // pred_check_branch
          %482 = sbr.rel (%p480) target = $region36
        $region35: #{decoder_forward.1} parent=11 // pred_region
          %s484 = ssub.s32 16, 16
          %485 = vsyncadd [#allocation13], %s484
          %s487 = sshll.u32 [#allocation12], 4
          %s488 = int_to_ptr.vmem [resolvable:$true] %s487
          %490 = dma.hbm_to_vmem [thread:$0]  %s5, 16, %s488, [#allocation13]
        $region36: #{decoder_forward.1} parent=11 // pred_fallthru
          _
        // Predicated region
        $region37: #{decoder_forward.1} parent=11 // pred_check
          %p491 = pneg %p231
        $region38: #{decoder_forward.1} parent=11 // pred_check_branch
          %493 = sbr.rel (%p491) target = $region40
        $region39: #{decoder_forward.1} parent=11 // pred_region
          %s495 = ssub.s32 128, 128
          %496 = vsyncadd [#allocation7], %s495
          %s497 = sshll.u32 [#allocation16], 4
          %s498 = int_to_ptr.vmem [resolvable:$true] %s497
          %503 = dma.hbm_to_vmem [thread:$0]  %s8, 128, %s498, [#allocation7], 64, 64, 4
        $region40: #{decoder_forward.1} parent=11 // pred_fallthru
          _
        // Predicated region
        $region41: #{decoder_forward.1} parent=11 // pred_check
          %p504 = pneg %p252
        $region42: #{decoder_forward.1} parent=11 // pred_check_branch
          %506 = sbr.rel (%p504) target = $region44
        $region43: #{decoder_forward.1} parent=11 // pred_region
          _
        $region44: #{decoder_forward.1} parent=11 // pred_fallthru
          _
        // Predicated region
        $region45: #{decoder_forward.1} parent=11 // pred_check
          %p507 = pneg %p273
        $region46: #{decoder_forward.1} parent=11 // pred_check_branch
          %509 = sbr.rel (%p507) target = $region48
        $region47: #{decoder_forward.1} parent=11 // pred_region
          %s511 = ssub.s32 16, 16
          %512 = vsyncadd [#allocation10], %s511
          %s514 = sshll.u32 [#allocation17], 4
          %s515 = int_to_ptr.vmem [resolvable:$true] %s514
          %517 = dma.hbm_to_vmem [thread:$0]  %s10, 16, %s515, [#allocation10]
        $region48: #{decoder_forward.1} parent=11 // pred_fallthru
          _
        // Predicated region
        $region49: #{decoder_forward.1} parent=11 // pred_check
          %p518 = pneg %p294
        $region50: #{decoder_forward.1} parent=11 // pred_check_branch
          %520 = sbr.rel (%p518) target = $region52
        $region51: #{decoder_forward.1} parent=11 // pred_region
          %s522 = ssub.s32 256, 256
          %523 = vsyncadd [#allocation13], %s522
          %s524 = sshll.u32 [#allocation18], 4
          %s525 = int_to_ptr.vmem [resolvable:$true] %s524
          %530 = dma.hbm_to_vmem [thread:$0]  %s11, 256, %s525, [#allocation13], 64, 64, 4
        $region52: #{decoder_forward.1} parent=11 // pred_fallthru
          _
        // Predicated region
        $region53: #{decoder_forward.1} parent=11 // pred_check
          %p531 = pneg %p315
        $region54: #{decoder_forward.1} parent=11 // pred_check_branch
          %533 = sbr.rel (%p531) target = $region56
        $region55: #{decoder_forward.1} parent=11 // pred_region
          %s535 = ssub.s32 256, 256
          %536 = vsyncadd [#allocation20], %s535
          %s537 = sshll.u32 [#allocation19], 4
          %s538 = int_to_ptr.vmem [resolvable:$true] %s537
          %543 = dma.hbm_to_vmem [thread:$0]  %s12, 256, %s538, [#allocation20], 64, 64, 4
        $region56: #{decoder_forward.1} parent=11 // pred_fallthru
          _
        // Predicated region
        $region57: #{decoder_forward.1} parent=11 // pred_check
          %p544 = pneg %p336
        $region58: #{decoder_forward.1} parent=11 // pred_check_branch
          %546 = sbr.rel (%p544) target = $region60
        $region59: #{decoder_forward.1} parent=11 // pred_region
          %s548 = ssub.s32 16, 16
          %549 = vsyncadd [#allocation20], %s548
          %s551 = sshll.u32 [#allocation21], 4
          %s552 = int_to_ptr.vmem [resolvable:$true] %s551
          %554 = dma.hbm_to_vmem [thread:$0]  %s13, 16, %s552, [#allocation20]
        $region60: #{decoder_forward.1} parent=11 // pred_fallthru
          _
      $region12: #{decoder_forward.1} parent=5 // pred_fallthru
        _
      %p555 = scmp.lt.s32.totalorder %s32, 3
      // Predicated region
      $region61: #{decoder_forward.1} parent=5 // pred_check
        %p556 = pneg %p555
      $region62: #{decoder_forward.1} parent=5 // pred_check_branch
        %558 = sbr.rel (%p556) target = $region64
      $region63: #{decoder_forward.1} parent=5 // pred_region
        // Predicated region
        $region65: #{decoder_forward.1} parent=63 // pred_check
          %p559 = pneg %p178
        $region66: #{decoder_forward.1} parent=63 // pred_check_branch
          %561 = sbr.rel (%p559) target = $region68
        $region67: #{decoder_forward.1} parent=63 // pred_region
          %s562 = sand.u32 %s168, 1
          %s563 = sand.u32 %s168, 1
          %s564 = smul.addr %s563, 16
          %s565 = scalar_lea.vmem [#allocation14], %s564
          %s566 = smul.addr %s32, 4
          %s567 = scalar_lea.vmem %s6, %s566
          // Predicated region
          $region69: #{decoder_forward.1} parent=67 // pred_check
            _
          $region70: #{decoder_forward.1} parent=67 // pred_check_branch
            %569 = sbr.rel (0) target = $region72
          $region71: #{decoder_forward.1} parent=67 // pred_region
            // Predicated region
            $region73: #{decoder_forward.1} parent=71 // pred_check
              _
            $region74: #{decoder_forward.1} parent=71 // pred_check_branch
              %571 = sbr.rel target = $region76
            $region75: #{decoder_forward.1} parent=71 // pred_region
              // Predicated region
              $region88: #{decoder_forward.1} parent=75 // pred_check
                _
              $region89: #{decoder_forward.1} parent=75 // pred_check_branch
                %592 = sbr.rel (0) target = $region91
              $region90: #{decoder_forward.1} parent=75 // pred_region
                loop: start=0, step=1, limit=1
                $region92: #{decoder_forward.1} parent=90 // loop_pre_header
                  _
                $region93: #{decoder_forward.1} parent=90 // loop_header
                  %s594 = sphi 0, %s598
                  %p595 = scmp.ge.s32.totalorder %s594, 1
                  %s599 = sphi %s567, %s567
                  %s600 = sphi %s565, %s565
                $region94: #{decoder_forward.1} parent=90 // loop_header_branch
                  %597 = sbr.rel (%p595) target = $region98
                $region95: #{decoder_forward.1} parent=90 // loop_body
                  _
                $region96: #{decoder_forward.1} parent=90 // loop_footer
                  %s598 = sadd.s32 1, %s594
                $region97: #{decoder_forward.1} parent=90 // loop_footer_branch
                  %593 = sbr.rel target = $region93
                $region98: #{decoder_forward.1} parent=90 // loop_exit
                  _
                loop: start=0, step=1, limit=1
                $region99: #{decoder_forward.1} parent=90 // loop_pre_header
                  _
                $region100: #{decoder_forward.1} parent=90 // loop_header
                  %s603 = sphi 0, %s607
                  %p604 = scmp.ge.s32.totalorder %s603, 1
                  %s608 = sphi %s567, %s567
                  %s609 = sphi %s565, %s565
                $region101: #{decoder_forward.1} parent=90 // loop_header_branch
                  %606 = sbr.rel (%p604) target = $region105
                $region102: #{decoder_forward.1} parent=90 // loop_body
                  %v610 = vld [vmem:[%s608] sm:$0xf]
                  %611 = vst [vmem:[%s609] sm:$0xf] %v610
                  %v612 = vld [vmem:[%s608 + $0xc] sm:$0xf]
                  %613 = vst [vmem:[%s609 + $0x4] sm:$0xf] %v612
                  %v614 = vld [vmem:[%s608 + $0x18] sm:$0xf]
                  %615 = vst [vmem:[%s609 + $0x8] sm:$0xf] %v614
                  %v616 = vld [vmem:[%s608 + $0x24] sm:$0xf]
                  %617 = vst [vmem:[%s609 + $0xc] sm:$0xf] %v616
                $region103: #{decoder_forward.1} parent=90 // loop_footer
                  %s607 = sadd.s32 1, %s603
                $region104: #{decoder_forward.1} parent=90 // loop_footer_branch
                  %602 = sbr.rel target = $region100
                $region105: #{decoder_forward.1} parent=90 // loop_exit
                  _
              $region91: #{decoder_forward.1} parent=75 // pred_fallthru
                _
            $region76: #{decoder_forward.1} parent=71 // pred_fallthru
              _
            // Predicated region
            $region77: #{decoder_forward.1} parent=71 // pred_check
              _
            $region78: #{decoder_forward.1} parent=71 // pred_check_branch
              %573 = sbr.rel (0) target = $region80
            $region79: #{decoder_forward.1} parent=71 // pred_region
              loop: start=0, step=1, limit=1
              $region81: #{decoder_forward.1} parent=79 // loop_pre_header
                _
              $region82: #{decoder_forward.1} parent=79 // loop_header
                %s576 = sphi 0, %s580
                %p577 = scmp.ge.s32.totalorder %s576, 1
                %s581 = sphi %s567, %s567
                %s582 = sphi %s565, %s565
              $region83: #{decoder_forward.1} parent=79 // loop_header_branch
                %579 = sbr.rel (%p577) target = $region87
              $region84: #{decoder_forward.1} parent=79 // loop_body
                %v583 = vld [vmem:[%s581] sm:$0xf]
                %584 = vst [vmem:[%s582] sm:$0xf] %v583
                %v585 = vld [vmem:[%s581 + $0xc] sm:$0xf]
                %586 = vst [vmem:[%s582 + $0x4] sm:$0xf] %v585
                %v587 = vld [vmem:[%s581 + $0x18] sm:$0xf]
                %588 = vst [vmem:[%s582 + $0x8] sm:$0xf] %v587
                %v589 = vld [vmem:[%s581 + $0x24] sm:$0xf]
                %590 = vst [vmem:[%s582 + $0xc] sm:$0xf] %v589
              $region85: #{decoder_forward.1} parent=79 // loop_footer
                %s580 = sadd.s32 1, %s576
              $region86: #{decoder_forward.1} parent=79 // loop_footer_branch
                %575 = sbr.rel target = $region82
              $region87: #{decoder_forward.1} parent=79 // loop_exit
                _
            $region80: #{decoder_forward.1} parent=71 // pred_fallthru
              _
          $region72: #{decoder_forward.1} parent=67 // pred_fallthru
            _
          %618 = vnop
        $region68: #{decoder_forward.1} parent=63 // pred_fallthru
          _
        // Predicated region
        $region106: #{decoder_forward.1} parent=63 // pred_check
          %p619 = pneg %p204
        $region107: #{decoder_forward.1} parent=63 // pred_check_branch
          %621 = sbr.rel (%p619) target = $region109
        $region108: #{decoder_forward.1} parent=63 // pred_region
          %s622 = sand.u32 %s32, 1
          %s623 = scalar_lea.sflag [#allocation4], %s622
          %s624 = sand.u32 %s194, 1
          %s625 = scalar_lea.vmem [#allocation15], %s624
          %s627 = ssub.s32 16, 16
          %628 = vsyncadd %s623, %s627
          %s629 = smul.addr %s32, 16
          %s630 = scalar_lea.hbm %s7, %s629
          %s632 = sshll.u32 %s625, 4
          %s633 = int_to_ptr.vmem [resolvable:$true] %s632
          %635 = dma.hbm_to_vmem [thread:$0]  %s630, 16, %s633, %s623
        $region109: #{decoder_forward.1} parent=63 // pred_fallthru
          _
      $region64: #{decoder_forward.1} parent=5 // pred_fallthru
        _
      %p636 = scmp.le.s32.totalorder 1, %s32
      %p637 = scmp.lt.s32.totalorder %s32, 4
      %p638 = pnand %p636, %p637
      %p639 = pneg %p638
      // Predicated region
      $region110: #{decoder_forward.1} parent=5 // pred_check
        _
      $region111: #{decoder_forward.1} parent=5 // pred_check_branch
        %641 = sbr.rel (%p638) target = $region113
      $region112: #{decoder_forward.1} parent=5 // pred_region
        %s642 = ssub.s32 %s32, 1
        // Predicated region
        $region114: #{decoder_forward.1} parent=112 // pred_check
          %p643 = pneg %p53
        $region115: #{decoder_forward.1} parent=112 // pred_check_branch
          %645 = sbr.rel (%p643) target = $region117
        $region116: #{decoder_forward.1} parent=112 // pred_region
          %646 = dma.done [#allocation4], 32
        $region117: #{decoder_forward.1} parent=112 // pred_fallthru
          _
        // Predicated region
        $region118: #{decoder_forward.1} parent=112 // pred_check
          %p647 = pneg %p74
        $region119: #{decoder_forward.1} parent=112 // pred_check_branch
          %649 = sbr.rel (%p647) target = $region121
        $region120: #{decoder_forward.1} parent=112 // pred_region
          %650 = dma.done [#allocation7], 32
        $region121: #{decoder_forward.1} parent=112 // pred_fallthru
          _
        // Predicated region
        $region122: #{decoder_forward.1} parent=112 // pred_check
          %p651 = pneg %p95
        $region123: #{decoder_forward.1} parent=112 // pred_check_branch
          %653 = sbr.rel (%p651) target = $region125
        $region124: #{decoder_forward.1} parent=112 // pred_region
          %654 = dma.done [#allocation7], 64
        $region125: #{decoder_forward.1} parent=112 // pred_fallthru
          _
        // Predicated region
        $region126: #{decoder_forward.1} parent=112 // pred_check
          %p655 = pneg %p116
        $region127: #{decoder_forward.1} parent=112 // pred_check_branch
          %657 = sbr.rel (%p655) target = $region129
        $region128: #{decoder_forward.1} parent=112 // pred_region
          %658 = dma.done [#allocation10], 64
        $region129: #{decoder_forward.1} parent=112 // pred_fallthru
          _
        // Predicated region
        $region130: #{decoder_forward.1} parent=112 // pred_check
          %p659 = pneg %p137
        $region131: #{decoder_forward.1} parent=112 // pred_check_branch
          %661 = sbr.rel (%p659) target = $region133
        $region132: #{decoder_forward.1} parent=112 // pred_region
          %662 = dma.done [#allocation10], 512
        $region133: #{decoder_forward.1} parent=112 // pred_fallthru
          _
        // Predicated region
        $region134: #{decoder_forward.1} parent=112 // pred_check
          %p663 = pneg %p158
        $region135: #{decoder_forward.1} parent=112 // pred_check_branch
          %665 = sbr.rel (%p663) target = $region137
        $region136: #{decoder_forward.1} parent=112 // pred_region
          %666 = dma.done [#allocation13], 16
        $region137: #{decoder_forward.1} parent=112 // pred_fallthru
          _
        %s667 = sand.u32 %s171, 1
        %s668 = sand.u32 %s171, 1
        %s669 = smul.addr %s668, 16
        %s670 = scalar_lea.vmem [#allocation14], %s669
        // Predicated region
        $region138: #{decoder_forward.1} parent=112 // pred_check
          %p671 = pneg %p184
        $region139: #{decoder_forward.1} parent=112 // pred_check_branch
          %673 = sbr.rel (%p671) target = $region141
        $region140: #{decoder_forward.1} parent=112 // pred_region
          _
        $region141: #{decoder_forward.1} parent=112 // pred_fallthru
          _
        %s674 = sand.u32 %s37, 1
        %s675 = scalar_lea.sflag [#allocation4], %s674
        %s676 = sand.u32 %s197, 1
        %s677 = scalar_lea.vmem [#allocation15], %s676
        // Predicated region
        $region142: #{decoder_forward.1} parent=112 // pred_check
          %p678 = pneg %p210
        $region143: #{decoder_forward.1} parent=112 // pred_check_branch
          %680 = sbr.rel (%p678) target = $region145
        $region144: #{decoder_forward.1} parent=112 // pred_region
          %681 = dma.done %s675, 16
        $region145: #{decoder_forward.1} parent=112 // pred_fallthru
          _
        // Predicated region
        $region146: #{decoder_forward.1} parent=112 // pred_check
          %p682 = pneg %p231
        $region147: #{decoder_forward.1} parent=112 // pred_check_branch
          %684 = sbr.rel (%p682) target = $region149
        $region148: #{decoder_forward.1} parent=112 // pred_region
          %685 = dma.done [#allocation7], 128
        $region149: #{decoder_forward.1} parent=112 // pred_fallthru
          _
        // Predicated region
        $region150: #{decoder_forward.1} parent=112 // pred_check
          %p686 = pneg %p273
        $region151: #{decoder_forward.1} parent=112 // pred_check_branch
          %688 = sbr.rel (%p686) target = $region153
        $region152: #{decoder_forward.1} parent=112 // pred_region
          %689 = dma.done [#allocation10], 16
        $region153: #{decoder_forward.1} parent=112 // pred_fallthru
          _
        // Predicated region
        $region154: #{decoder_forward.1} parent=112 // pred_check
          %p690 = pneg %p294
        $region155: #{decoder_forward.1} parent=112 // pred_check_branch
          %692 = sbr.rel (%p690) target = $region157
        $region156: #{decoder_forward.1} parent=112 // pred_region
          %693 = dma.done [#allocation13], 256
        $region157: #{decoder_forward.1} parent=112 // pred_fallthru
          _
        // Predicated region
        $region158: #{decoder_forward.1} parent=112 // pred_check
          %p694 = pneg %p315
        $region159: #{decoder_forward.1} parent=112 // pred_check_branch
          %696 = sbr.rel (%p694) target = $region161
        $region160: #{decoder_forward.1} parent=112 // pred_region
          %697 = dma.done [#allocation20], 256
        $region161: #{decoder_forward.1} parent=112 // pred_fallthru
          _
        // Predicated region
        $region162: #{decoder_forward.1} parent=112 // pred_check
          %p698 = pneg %p336
        $region163: #{decoder_forward.1} parent=112 // pred_check_branch
          %700 = sbr.rel (%p698) target = $region165
        $region164: #{decoder_forward.1} parent=112 // pred_region
          %701 = dma.done [#allocation20], 16
        $region165: #{decoder_forward.1} parent=112 // pred_fallthru
          _
        %p702 = pneg %p53
        %p703 = pneg %p50
        %p704 = pneg %p74
        %p705 = pneg %p71
        %p706 = pneg %p95
        %p707 = pneg %p92
        %p708 = pneg %p116
        %p709 = pneg %p113
        %p710 = pneg %p137
        %p711 = pneg %p134
        %p712 = pneg %p158
        %p713 = pneg %p155
        %s714 = sand.u32 %s171, 1
        %s715 = sand.u32 %s171, 1
        %s716 = smul.addr %s715, 16
        %s717 = scalar_lea.vmem [#allocation14], %s716
        %p718 = pneg %p184
        %p719 = pneg %p181
        %s720 = sand.u32 %s37, 1
        %s721 = scalar_lea.sflag [#allocation4], %s720
        %s722 = sand.u32 %s197, 1
        %s723 = scalar_lea.vmem [#allocation15], %s722
        %p724 = pneg %p210
        %p725 = pneg %p207
        %p726 = pneg %p231
        %p727 = pneg %p228
        %p728 = pneg %p252
        %p729 = pneg %p249
        %p730 = pneg %p273
        %p731 = pneg %p270
        %p732 = pneg %p294
        %p733 = pneg %p291
        %p734 = pneg %p315
        %p735 = pneg %p312
        %p736 = pneg %p336
        %p737 = pneg %p333
        %p738 = pneg %p362
        %p739 = pneg %p359
        %s740 = sand.u32 %s349, 1
        %s741 = scalar_lea.sflag [#allocation5], %s740
        %s742 = sand.u32 %s349, 1
        %s743 = smul.addr %s742, 2
        %s744 = scalar_lea.vmem [#allocation22], %s743
        %p745 = pneg %p383
        %p746 = pneg %p380
        %p747 = pneg %p404
        %p748 = pneg %p401
        %p750 = scmp.eq.s32.totalorder %s37, 0
        // Predicated region
        $region166: #{decoder_forward.1} parent=112 // pred_check
          %p751 = pneg %p750
        $region167: #{decoder_forward.1} parent=112 // pred_check_branch
          %753 = sbr.rel (%p751) target = $region169
        $region168: #{decoder_forward.1} parent=112 // pred_region
          %v754 = vld [vmem:[#allocation3] sm:$0x3]
          %v755 = vld [vmem:[#allocation11] sm:$0xff]
          %v756 = vld [vmem:[#allocation11 + $0x8] sm:$0xff]
          %v757 = vld [vmem:[#allocation11 + $0x10] sm:$0xff]
          %v758 = vld [vmem:[#allocation11 + $0x18] sm:$0xff]
          %v759 = vld [vmem:[#allocation12] sm:$0x1]
          %v761 = vlaneseq
          %v762 = vshrl.u32 %v761, 7
          %v763 = vsub.s32 0, %v762
          %v764 = vrot.slane %v759, %v763
          %vm766 = vcmask 261120
          %v768 = vsel %vm766, %v754, 0
          %770 = vmatprep.subr.mxu0 0.0
          %771 = vmatpush1.msra.mxu0 %v755
          %772 = vmatprep.subr.mxu0 0.0
          %773 = vmatpush1.msra.mxu0 %v756
          %774 = vmatprep.subr.mxu0 0.0
          %775 = vmatpush1.msra.mxu0 %v757
          %776 = vmatprep.subr.mxu0 0.0
          %777 = vmatpush1.msra.mxu0 %v758
          %778 = vmatprep.subr.mxu0 0.0
          %779 = vmatpush1.msra.mxu0 0.0
          %780 = vmatprep.subr.mxu0 0.0
          %781 = vmatpush1.msra.mxu0 0.0
          %782 = vmatprep.subr.mxu0 0.0
          %783 = vmatpush1.msra.mxu0 0.0
          %784 = vmatprep.subr.mxu0 0.0
          %785 = vmatpush1.msra.mxu0 0.0
          %786 = vmatprep.subr.mxu0 0.0
          %787 = vmatpush1.msra.mxu0 0.0
          %788 = vmatprep.subr.mxu0 0.0
          %789 = vmatpush1.msra.mxu0 0.0
          %790 = vmatprep.subr.mxu0 0.0
          %791 = vmatpush1.msra.mxu0 0.0
          %792 = vmatprep.subr.mxu0 0.0
          %793 = vmatpush1.msra.mxu0 0.0
          %794 = vmatprep.subr.mxu0 0.0
          %795 = vmatpush1.msra.mxu0 0.0
          %796 = vmatprep.subr.mxu0 0.0
          %797 = vmatpush1.msra.mxu0 0.0
          %798 = vmatprep.subr.mxu0 0.0
          %799 = vmatpush1.msra.mxu0 0.0
          %800 = vmatprep.subr.mxu0 0.0
          %801 = vmatpush1.msra.mxu0 0.0
          %802 = vmatprep.subr.mxu0 0.0
          %803 = vmatpush1.msra.mxu0 0.0
          %804 = vmatprep.subr.mxu0 0.0
          %805 = vmatpush1.msra.mxu0 0.0
          %806 = vmatprep.subr.mxu0 0.0
          %807 = vmatpush1.msra.mxu0 0.0
          %808 = vmatprep.subr.mxu0 0.0
          %809 = vmatpush1.msra.mxu0 0.0
          %810 = vmatprep.subr.mxu0 0.0
          %811 = vmatpush1.msra.mxu0 0.0
          %812 = vmatprep.subr.mxu0 0.0
          %813 = vmatpush1.msra.mxu0 0.0
          %814 = vmatprep.subr.mxu0 0.0
          %815 = vmatpush1.msra.mxu0 0.0
          %816 = vmatprep.subr.mxu0 0.0
          %817 = vmatpush1.msra.mxu0 0.0
          %818 = vmatprep.subr.mxu0 0.0
          %819 = vmatpush1.msra.mxu0 0.0
          %820 = vmatprep.subr.mxu0 0.0
          %821 = vmatpush1.msra.mxu0 0.0
          %822 = vmatprep.subr.mxu0 0.0
          %823 = vmatpush1.msra.mxu0 0.0
          %824 = vmatprep.subr.mxu0 0.0
          %825 = vmatpush1.msra.mxu0 0.0
          %826 = vmatprep.subr.mxu0 0.0
          %827 = vmatpush1.msra.mxu0 0.0
          %828 = vmatprep.subr.mxu0 0.0
          %829 = vmatpush1.msra.mxu0 0.0
          %830 = vmatprep.subr.mxu0 0.0
          %831 = vmatpush1.msra.mxu0 0.0
          %832 = vmatprep.subr.mxu0 0.0
          %833 = vmatpush1.msra.mxu0 0.0
          %834 = vmatprep.mubr.f32.mxu0 0.0
          %835 = vmatmul.mubr.f32.gmra.mrb[0].mxu0 %v768
          %v836 = vpop.f32.mrb[0].mxu0
          %v837 = vadd.f32 %v764, %v836
          %v838 = vpop.f32.mrb[0].mxu0
          %839 = vdwg.mxu0
          %v840 = vmax.f32 %v837, 0.0
          %vm841 = vcmask 254976
          %842 = vst.msk [vmem:[#allocation2] sm:$0x3] %vm841, %v840
          %v843 = vld [vmem:[#allocation6] sm:$0x3]
          %v844 = vld [vmem:[#allocation17] sm:$0x1]
          %v845 = vld [vmem:[#allocation8] sm:$0x3]
          %v846 = vld [vmem:[#allocation9] sm:$0x3]
          %v847 = vpack.c.bf16 %v843, %v843
          %v848 = vld [vmem:[#allocation16] sm:$0xf]
          %v849 = vld [vmem:[#allocation16 + $0x4] sm:$0xf]
          %v850 = vpack.c.bf16 %v845, %v845
          %v851 = vld [vmem:[%s9] sm:$0xf]
          %v852 = vld [vmem:[%s9 + $0x4] sm:$0xf]
          %v853 = vld [vmem:[%s9 + $0x8] sm:$0xf]
          %v854 = vld [vmem:[%s9 + $0xc] sm:$0xf]
          %v859 = vunpack.c.l.b16 %v851
          %v860 = vunpack.c.l.b16 %v852
          %v861 = vunpack.c.l.b16 %v853
          %v862 = vunpack.c.l.b16 %v854
          %v863 = vpack.c.b16 %v860, %v859
          %v864 = vpack.c.b16 %v862, %v861
          %v868 = vsel %vm766, %v850, 0
          %870 = vmatprep.subr.bf16.mxu0 0
          %871 = vmatpush1.bf16.msra.mxu0 %v863
          %872 = vmatprep.subr.bf16.mxu0 0
          %873 = vmatpush1.bf16.msra.mxu0 %v864
          %874 = vmatprep.subr.bf16.mxu0 0
          %875 = vmatpush1.bf16.msra.mxu0 0
          %876 = vmatprep.subr.bf16.mxu0 0
          %877 = vmatpush1.bf16.msra.mxu0 0
          %878 = vmatprep.subr.bf16.mxu0 0
          %879 = vmatpush1.bf16.msra.mxu0 0
          %880 = vmatprep.subr.bf16.mxu0 0
          %881 = vmatpush1.bf16.msra.mxu0 0
          %882 = vmatprep.subr.bf16.mxu0 0
          %883 = vmatpush1.bf16.msra.mxu0 0
          %884 = vmatprep.subr.bf16.mxu0 0
          %885 = vmatpush1.bf16.msra.mxu0 0
          %886 = vmatprep.subr.bf16.mxu0 0
          %887 = vmatpush1.bf16.msra.mxu0 0
          %888 = vmatprep.subr.bf16.mxu0 0
          %889 = vmatpush1.bf16.msra.mxu0 0
          %890 = vmatprep.subr.bf16.mxu0 0
          %891 = vmatpush1.bf16.msra.mxu0 0
          %892 = vmatprep.subr.bf16.mxu0 0
          %893 = vmatpush1.bf16.msra.mxu0 0
          %894 = vmatprep.subr.bf16.mxu0 0
          %895 = vmatpush1.bf16.msra.mxu0 0
          %896 = vmatprep.subr.bf16.mxu0 0
          %897 = vmatpush1.bf16.msra.mxu0 0
          %898 = vmatprep.subr.bf16.mxu0 0
          %899 = vmatpush1.bf16.msra.mxu0 0
          %900 = vmatprep.subr.bf16.mxu0 0
          %901 = vmatpush1.bf16.msra.mxu0 0
          %902 = vmatprep.mubr.bf16.mxu0 0
          %903 = vmatmul.mubr.bf16.gmra.mrb[0].mxu0 %v868
          %v904 = vpop.f32.mrb[0].mxu0
          %v905 = vadd.f32 0.0, %v904
          %v906 = vpop.f32.mrb[0].mxu0
          %v907 = vpop.f32.mrb[0].mxu0
          %v908 = vpop.f32.mrb[0].mxu0
          %909 = vdwg.mxu0
          %v912 = vunpack.c.l.b16 %v848
          %v913 = vunpack.c.l.b16 %v849
          %v914 = vpack.c.b16 %v913, %v912
          %vm916 = vcmask 130048
          %v918 = vsel %vm916, %v847, 0
          %920 = vmatprep.subr.bf16.mxu0 0
          %921 = vmatpush1.bf16.msra.mxu0 %v914
          %922 = vmatprep.subr.bf16.mxu0 0
          %923 = vmatpush1.bf16.msra.mxu0 0
          %924 = vmatprep.subr.bf16.mxu0 0
          %925 = vmatpush1.bf16.msra.mxu0 0
          %926 = vmatprep.subr.bf16.mxu0 0
          %927 = vmatpush1.bf16.msra.mxu0 0
          %928 = vmatprep.subr.bf16.mxu0 0
          %929 = vmatpush1.bf16.msra.mxu0 0
          %930 = vmatprep.subr.bf16.mxu0 0
          %931 = vmatpush1.bf16.msra.mxu0 0
          %932 = vmatprep.subr.bf16.mxu0 0
          %933 = vmatpush1.bf16.msra.mxu0 0
          %934 = vmatprep.subr.bf16.mxu0 0
          %935 = vmatpush1.bf16.msra.mxu0 0
          %936 = vmatprep.subr.bf16.mxu0 0
          %937 = vmatpush1.bf16.msra.mxu0 0
          %938 = vmatprep.subr.bf16.mxu0 0
          %939 = vmatpush1.bf16.msra.mxu0 0
          %940 = vmatprep.subr.bf16.mxu0 0
          %941 = vmatpush1.bf16.msra.mxu0 0
          %942 = vmatprep.subr.bf16.mxu0 0
          %943 = vmatpush1.bf16.msra.mxu0 0
          %944 = vmatprep.subr.bf16.mxu0 0
          %945 = vmatpush1.bf16.msra.mxu0 0
          %946 = vmatprep.subr.bf16.mxu0 0
          %947 = vmatpush1.bf16.msra.mxu0 0
          %948 = vmatprep.subr.bf16.mxu0 0
          %949 = vmatpush1.bf16.msra.mxu0 0
          %950 = vmatprep.subr.bf16.mxu0 0
          %951 = vmatpush1.bf16.msra.mxu0 0
          %952 = vmatprep.mubr.bf16.mxu0 0
          %953 = vmatmul.mubr.bf16.gmra.mrb[0].mxu0 %v918
          %v954 = vpop.f32.mrb[0].mxu0
          %v955 = vadd.f32 %v905, %v954
          %v956 = vpop.f32.mrb[0].mxu0
          %v957 = vpop.f32.mrb[0].mxu0
          %v958 = vpop.f32.mrb[0].mxu0
          %959 = vdwg.mxu0
          %v961 = vlaneseq
          %v962 = vshrl.u32 %v961, 7
          %v963 = vsub.s32 0, %v962
          %v964 = vrot.slane %v844, %v963
          %v966 = vadd.f32 %v955, %v964
          %v967 = vxor.u32 %v966, 2147483648
          %v968 = vmul.f32 %v967, 1.442695
          %v969 = vpow.pop %v968
          %v970 = vadd.f32 %v969, 1.0
          %v971 = vrcp.pop %v970
          %v972 = vmul.f32 1.0, %v971
          %v973 = vtanh.pop %v966
          %975 = vrot.lane.b32.xlu0 %v846, 32
          %v976 = vpop.permute.xlu0 %975
          %v978 = vmul.f32 %v972, %v976
          %980 = vrot.lane.b32.xlu0 %v973, 64
          %v981 = vpop.permute.xlu0 %980
          %v983 = vmul.f32 %v972, %v981
          %985 = vrot.lane.b32.xlu0 %v983, 32
          %v986 = vpop.permute.xlu0 %985
          %v988 = vadd.f32 %v978, %v986
          %v989 = vtanh.pop %v988
          %991 = vrot.lane.b32.xlu0 %v989, 64
          %v992 = vpop.permute.xlu0 %991
          %v994 = vmul.f32 %v972, %v992
          %996 = vrot.lane.b32.xlu0 %v994, 32
          %v997 = vpop.permute.xlu0 %996
          %999 = vst.msk [vmem:[%s15] sm:$0x3] %vm841, %v997
          %1001 = vrot.lane.b32.xlu0 %v988, 96
          %v1002 = vpop.permute.xlu0 %1001
          %1004 = vst.msk [vmem:[#allocation23] sm:$0x3] %vm841, %v1002
          %v1005 = vld [vmem:[#allocation21] sm:$0x1]
          %s1006 = scalar_lea.vmem [#allocation8], 2
          %v1007 = vld [vmem:[%s1006] sm:$0x3]
          %s1008 = scalar_lea.vmem [#allocation9], 2
          %v1009 = vld [vmem:[%s1008] sm:$0x3]
          %v1010 = vpack.c.bf16 %v994, %v994
          %v1011 = vld [vmem:[#allocation18] sm:$0xf]
          %v1012 = vld [vmem:[#allocation18 + $0x4] sm:$0xf]
          %v1013 = vld [vmem:[#allocation18 + $0x8] sm:$0xf]
          %v1014 = vld [vmem:[#allocation18 + $0xc] sm:$0xf]
          %v1015 = vpack.c.bf16 %v1007, %v1007
          %v1016 = vld [vmem:[#allocation19] sm:$0xf]
          %v1017 = vld [vmem:[#allocation19 + $0x4] sm:$0xf]
          %v1018 = vld [vmem:[#allocation19 + $0x8] sm:$0xf]
          %v1019 = vld [vmem:[#allocation19 + $0xc] sm:$0xf]
          %v1024 = vunpack.c.l.b16 %v1016
          %v1025 = vunpack.c.l.b16 %v1017
          %v1026 = vunpack.c.l.b16 %v1018
          %v1027 = vunpack.c.l.b16 %v1019
          %v1028 = vpack.c.b16 %v1025, %v1024
          %v1029 = vpack.c.b16 %v1027, %v1026
          %v1033 = vsel %vm766, %v1015, 0
          %1035 = vmatprep.subr.bf16.mxu0 0
          %1036 = vmatpush1.bf16.msra.mxu0 %v1028
          %1037 = vmatprep.subr.bf16.mxu0 0
          %1038 = vmatpush1.bf16.msra.mxu0 %v1029
          %1039 = vmatprep.subr.bf16.mxu0 0
          %1040 = vmatpush1.bf16.msra.mxu0 0
          %1041 = vmatprep.subr.bf16.mxu0 0
          %1042 = vmatpush1.bf16.msra.mxu0 0
          %1043 = vmatprep.subr.bf16.mxu0 0
          %1044 = vmatpush1.bf16.msra.mxu0 0
          %1045 = vmatprep.subr.bf16.mxu0 0
          %1046 = vmatpush1.bf16.msra.mxu0 0
          %1047 = vmatprep.subr.bf16.mxu0 0
          %1048 = vmatpush1.bf16.msra.mxu0 0
          %1049 = vmatprep.subr.bf16.mxu0 0
          %1050 = vmatpush1.bf16.msra.mxu0 0
          %1051 = vmatprep.subr.bf16.mxu0 0
          %1052 = vmatpush1.bf16.msra.mxu0 0
          %1053 = vmatprep.subr.bf16.mxu0 0
          %1054 = vmatpush1.bf16.msra.mxu0 0
          %1055 = vmatprep.subr.bf16.mxu0 0
          %1056 = vmatpush1.bf16.msra.mxu0 0
          %1057 = vmatprep.subr.bf16.mxu0 0
          %1058 = vmatpush1.bf16.msra.mxu0 0
          %1059 = vmatprep.subr.bf16.mxu0 0
          %1060 = vmatpush1.bf16.msra.mxu0 0
          %1061 = vmatprep.subr.bf16.mxu0 0
          %1062 = vmatpush1.bf16.msra.mxu0 0
          %1063 = vmatprep.subr.bf16.mxu0 0
          %1064 = vmatpush1.bf16.msra.mxu0 0
          %1065 = vmatprep.subr.bf16.mxu0 0
          %1066 = vmatpush1.bf16.msra.mxu0 0
          %1067 = vmatprep.mubr.bf16.mxu0 0
          %1068 = vmatmul.mubr.bf16.gmra.mrb[0].mxu0 %v1033
          %v1069 = vpop.f32.mrb[0].mxu0
          %v1070 = vadd.f32 0.0, %v1069
          %v1071 = vpop.f32.mrb[0].mxu0
          %v1072 = vpop.f32.mrb[0].mxu0
          %v1073 = vpop.f32.mrb[0].mxu0
          %1074 = vdwg.mxu0
          %1076 = vrot.lane.b32.xlu0 %v1010, 32
          %v1077 = vpop.permute.xlu0 %1076
          %v1082 = vunpack.c.l.b16 %v1011
          %v1083 = vunpack.c.l.b16 %v1012
          %v1084 = vunpack.c.l.b16 %v1013
          %v1085 = vunpack.c.l.b16 %v1014
          %v1086 = vpack.c.b16 %v1083, %v1082
          %v1087 = vpack.c.b16 %v1085, %v1084
          %v1091 = vsel %vm766, %v1077, 0
          %1093 = vmatprep.subr.bf16.mxu0 0
          %1094 = vmatpush1.bf16.msra.mxu0 %v1086
          %1095 = vmatprep.subr.bf16.mxu0 0
          %1096 = vmatpush1.bf16.msra.mxu0 %v1087
          %1097 = vmatprep.subr.bf16.mxu0 0
          %1098 = vmatpush1.bf16.msra.mxu0 0
          %1099 = vmatprep.subr.bf16.mxu0 0
          %1100 = vmatpush1.bf16.msra.mxu0 0
          %1101 = vmatprep.subr.bf16.mxu0 0
          %1102 = vmatpush1.bf16.msra.mxu0 0
          %1103 = vmatprep.subr.bf16.mxu0 0
          %1104 = vmatpush1.bf16.msra.mxu0 0
          %1105 = vmatprep.subr.bf16.mxu0 0
          %1106 = vmatpush1.bf16.msra.mxu0 0
          %1107 = vmatprep.subr.bf16.mxu0 0
          %1108 = vmatpush1.bf16.msra.mxu0 0
          %1109 = vmatprep.subr.bf16.mxu0 0
          %1110 = vmatpush1.bf16.msra.mxu0 0
          %1111 = vmatprep.subr.bf16.mxu0 0
          %1112 = vmatpush1.bf16.msra.mxu0 0
          %1113 = vmatprep.subr.bf16.mxu0 0
          %1114 = vmatpush1.bf16.msra.mxu0 0
          %1115 = vmatprep.subr.bf16.mxu0 0
          %1116 = vmatpush1.bf16.msra.mxu0 0
          %1117 = vmatprep.subr.bf16.mxu0 0
          %1118 = vmatpush1.bf16.msra.mxu0 0
          %1119 = vmatprep.subr.bf16.mxu0 0
          %1120 = vmatpush1.bf16.msra.mxu0 0
          %1121 = vmatprep.subr.bf16.mxu0 0
          %1122 = vmatpush1.bf16.msra.mxu0 0
          %1123 = vmatprep.subr.bf16.mxu0 0
          %1124 = vmatpush1.bf16.msra.mxu0 0
          %1125 = vmatprep.mubr.bf16.mxu0 0
          %1126 = vmatmul.mubr.bf16.gmra.mrb[0].mxu0 %v1091
          %v1127 = vpop.f32.mrb[0].mxu0
          %v1128 = vadd.f32 %v1070, %v1127
          %v1129 = vpop.f32.mrb[0].mxu0
          %v1130 = vpop.f32.mrb[0].mxu0
          %v1131 = vpop.f32.mrb[0].mxu0
          %1132 = vdwg.mxu0
          %v1134 = vlaneseq
          %v1135 = vshrl.u32 %v1134, 7
          %v1136 = vsub.s32 0, %v1135
          %v1137 = vrot.slane %v1005, %v1136
          %v1139 = vadd.f32 %v1128, %v1137
          %v1140 = vxor.u32 %v1139, 2147483648
          %v1141 = vmul.f32 %v1140, 1.442695
          %v1142 = vpow.pop %v1141
          %v1143 = vadd.f32 %v1142, 1.0
          %v1144 = vrcp.pop %v1143
          %v1145 = vmul.f32 1.0, %v1144
          %v1146 = vtanh.pop %v1139
          %1148 = vrot.lane.b32.xlu0 %v1009, 32
          %v1149 = vpop.permute.xlu0 %1148
          %v1151 = vmul.f32 %v1145, %v1149
          %1153 = vrot.lane.b32.xlu0 %v1146, 64
          %v1154 = vpop.permute.xlu0 %1153
          %v1156 = vmul.f32 %v1145, %v1154
          %1158 = vrot.lane.b32.xlu0 %v1156, 32
          %v1159 = vpop.permute.xlu0 %1158
          %v1161 = vadd.f32 %v1151, %v1159
          %v1162 = vtanh.pop %v1161
          %1164 = vrot.lane.b32.xlu0 %v1162, 64
          %v1165 = vpop.permute.xlu0 %1164
          %v1167 = vmul.f32 %v1145, %v1165
          %1169 = vrot.lane.b32.xlu0 %v1167, 32
          %v1170 = vpop.permute.xlu0 %1169
          %s1172 = scalar_lea.vmem %s15, 2
          %1173 = vst.msk [vmem:[%s1172] sm:$0x3] %vm841, %v1170
          %1175 = vrot.lane.b32.xlu0 %v1161, 96
          %v1176 = vpop.permute.xlu0 %1175
          %s1178 = scalar_lea.vmem [#allocation23], 2
          %1179 = vst.msk [vmem:[%s1178] sm:$0x3] %vm841, %v1176
        $region169: #{decoder_forward.1} parent=112 // pred_fallthru
          _
        %v1180 = vld [vmem:[#allocation2] sm:$0x3]
        %v1181 = vpack.c.bf16 %v1180, %v1180
        %v1182 = vld [vmem:[%s670] sm:$0xf]
        %v1183 = vld [vmem:[%s670 + $0x4] sm:$0xf]
        %v1184 = vld [vmem:[%s670 + $0x8] sm:$0xf]
        %v1185 = vld [vmem:[%s670 + $0xc] sm:$0xf]
        %v1186 = vld [vmem:[%s677] sm:$0x1]
        %v1188 = vlaneseq
        %v1189 = vshrl.u32 %v1188, 7
        %v1190 = vsub.s32 0, %v1189
        %v1191 = vrot.slane %v1186, %v1190
        %v1197 = vunpack.c.l.b16 %v1182
        %v1198 = vunpack.c.l.b16 %v1183
        %v1199 = vunpack.c.l.b16 %v1184
        %v1200 = vunpack.c.l.b16 %v1185
        %v1201 = vpack.c.b16 %v1198, %v1197
        %v1202 = vpack.c.b16 %v1200, %v1199
        %vm1205 = vcmask 261120
        %v1207 = vsel %vm1205, %v1181, 0
        %1209 = vmatprep.subr.bf16.mxu0 0
        %1210 = vmatpush1.bf16.msra.mxu0 %v1201
        %1211 = vmatprep.subr.bf16.mxu0 0
        %1212 = vmatpush1.bf16.msra.mxu0 %v1202
        %1213 = vmatprep.subr.bf16.mxu0 0
        %1214 = vmatpush1.bf16.msra.mxu0 0
        %1215 = vmatprep.subr.bf16.mxu0 0
        %1216 = vmatpush1.bf16.msra.mxu0 0
        %1217 = vmatprep.subr.bf16.mxu0 0
        %1218 = vmatpush1.bf16.msra.mxu0 0
        %1219 = vmatprep.subr.bf16.mxu0 0
        %1220 = vmatpush1.bf16.msra.mxu0 0
        %1221 = vmatprep.subr.bf16.mxu0 0
        %1222 = vmatpush1.bf16.msra.mxu0 0
        %1223 = vmatprep.subr.bf16.mxu0 0
        %1224 = vmatpush1.bf16.msra.mxu0 0
        %1225 = vmatprep.subr.bf16.mxu0 0
        %1226 = vmatpush1.bf16.msra.mxu0 0
        %1227 = vmatprep.subr.bf16.mxu0 0
        %1228 = vmatpush1.bf16.msra.mxu0 0
        %1229 = vmatprep.subr.bf16.mxu0 0
        %1230 = vmatpush1.bf16.msra.mxu0 0
        %1231 = vmatprep.subr.bf16.mxu0 0
        %1232 = vmatpush1.bf16.msra.mxu0 0
        %1233 = vmatprep.subr.bf16.mxu0 0
        %1234 = vmatpush1.bf16.msra.mxu0 0
        %1235 = vmatprep.subr.bf16.mxu0 0
        %1236 = vmatpush1.bf16.msra.mxu0 0
        %1237 = vmatprep.subr.bf16.mxu0 0
        %1238 = vmatpush1.bf16.msra.mxu0 0
        %1239 = vmatprep.subr.bf16.mxu0 0
        %1240 = vmatpush1.bf16.msra.mxu0 0
        %1241 = vmatprep.mubr.bf16.mxu0 0
        %1242 = vmatmul.mubr.bf16.gmra.mrb[0].mxu0 %v1207
        %v1243 = vpop.f32.mrb[0].mxu0
        %v1244 = vadd.f32 %v1191, %v1243
        %v1245 = vpop.f32.mrb[0].mxu0
        %v1246 = vpop.f32.mrb[0].mxu0
        %v1247 = vpop.f32.mrb[0].mxu0
        %1248 = vdwg.mxu0
        %1249 = vst [vmem:[%s744] sm:$0x3] %v1244
        %s1250 = sand.u32 %s349, 1
        %s1251 = scalar_lea.sflag [#allocation5], %s1250
        %s1252 = sand.u32 %s349, 1
        %s1253 = smul.addr %s1252, 2
        %s1254 = scalar_lea.vmem [#allocation22], %s1253
        // Predicated region
        $region170: #{decoder_forward.1} parent=112 // pred_check
          %p1255 = pneg %p359
        $region171: #{decoder_forward.1} parent=112 // pred_check_branch
          %1257 = sbr.rel (%p1255) target = $region173
        $region172: #{decoder_forward.1} parent=112 // pred_region
          %s1259 = ssub.s32 32, 32
          %1260 = vsyncadd %s1251, %s1259
          %s1261 = smul.addr %s37, 32
          %s1262 = scalar_lea.hbm %s14, %s1261
          %s1264 = sshll.u32 %s1254, 4
          %s1265 = int_to_ptr.vmem [resolvable:$true] %s1264
          %1267 = dma.vmem_to_hbm [thread:$0]  %s1265, 32, %s1262, %s1251
        $region173: #{decoder_forward.1} parent=112 // pred_fallthru
          _
        // Predicated region
        $region174: #{decoder_forward.1} parent=112 // pred_check
          %p1268 = pneg %p380
        $region175: #{decoder_forward.1} parent=112 // pred_check_branch
          %1270 = sbr.rel (%p1268) target = $region177
        $region176: #{decoder_forward.1} parent=112 // pred_region
          _
        $region177: #{decoder_forward.1} parent=112 // pred_fallthru
          _
        // Predicated region
        $region178: #{decoder_forward.1} parent=112 // pred_check
          %p1271 = pneg %p401
        $region179: #{decoder_forward.1} parent=112 // pred_check_branch
          %1273 = sbr.rel (%p1271) target = $region181
        $region180: #{decoder_forward.1} parent=112 // pred_region
          %s1275 = ssub.s32 64, 64
          %1276 = vsyncadd [#allocation24], %s1275
          %s1277 = sshll.u32 [#allocation23], 4
          %s1278 = int_to_ptr.vmem [resolvable:$true] %s1277
          %1283 = dma.vmem_to_hbm [thread:$0]  %s1278, 64, %s16, [#allocation24], 32, 32, 2
        $region181: #{decoder_forward.1} parent=112 // pred_fallthru
          _
        // Predicated region
        $region182: #{decoder_forward.1} parent=112 // pred_check
          %p1284 = pneg %p380
        $region183: #{decoder_forward.1} parent=112 // pred_check_branch
          %1286 = sbr.rel (%p1284) target = $region185
        $region184: #{decoder_forward.1} parent=112 // pred_region
          _
        $region185: #{decoder_forward.1} parent=112 // pred_fallthru
          _
        // Predicated region
        $region186: #{decoder_forward.1} parent=112 // pred_check
          %p1287 = pneg %p401
        $region187: #{decoder_forward.1} parent=112 // pred_check_branch
          %1289 = sbr.rel (%p1287) target = $region189
        $region188: #{decoder_forward.1} parent=112 // pred_region
          %1290 = dma.done [#allocation24], 64
        $region189: #{decoder_forward.1} parent=112 // pred_fallthru
          _
      $region113: #{decoder_forward.1} parent=5 // pred_fallthru
        _
      %p1291 = scmp.le.s32.totalorder 2, %s32
      // Predicated region
      $region190: #{decoder_forward.1} parent=5 // pred_check
        %p1292 = pneg %p1291
      $region191: #{decoder_forward.1} parent=5 // pred_check_branch
        %1294 = sbr.rel (%p1292) target = $region193
      $region192: #{decoder_forward.1} parent=5 // pred_region
        %s1295 = ssub.s32 %s32, 2
        // Predicated region
        $region194: #{decoder_forward.1} parent=192 // pred_check
          %p1296 = pneg %p365
        $region195: #{decoder_forward.1} parent=192 // pred_check_branch
          %1298 = sbr.rel (%p1296) target = $region197
        $region196: #{decoder_forward.1} parent=192 // pred_region
          %s1299 = sand.u32 %s350, 1
          %s1300 = scalar_lea.sflag [#allocation5], %s1299
          %s1301 = sand.u32 %s350, 1
          %s1302 = smul.addr %s1301, 2
          %s1303 = scalar_lea.vmem [#allocation22], %s1302
          %1304 = dma.done %s1300, 32
        $region197: #{decoder_forward.1} parent=192 // pred_fallthru
          _
      $region193: #{decoder_forward.1} parent=5 // pred_fallthru
        _
    $region6: #{decoder_forward.1} parent=1 // loop_footer
      %s36 = sadd.s32 1, %s32
    $region7: #{decoder_forward.1} parent=1 // loop_footer_branch
      %31 = sbr.rel target = $region3
    $region8: #{decoder_forward.1} parent=1 // loop_exit
      _
    %1305 = vsyncpa [#allocation4], 1
    %s1306 = scalar_lea.sflag [#allocation4], 1
    %1307 = vsyncpa %s1306, 1
    %1308 = vsyncpa [#allocation7], 1
    %1309 = vsyncpa [#allocation10], 1
    %1310 = vsyncpa [#allocation13], 1
    %1311 = vsyncpa [#allocation20], 1
    %1312 = vsyncpa [#allocation5], 1
    %s1313 = scalar_lea.sflag [#allocation5], 1
    %1314 = vsyncpa %s1313, 1
    %1315 = vsyncpa [#allocation24], 1

</llo_original>
